<compile_context>
chip_gen: v7x
topology: tpu7x:2x2x1
jax: 0.10.0
libtpu: 0.0.40
codegen_flags: <defaults>
</compile_context>

<pallas_src>
import functools

import numpy as np
import jax
import jax.numpy as jnp
from jax.experimental import pallas as pl
from jax.experimental.pallas import tpu as pltpu


def _round_up(x: int, m: int) -> int:
    return ((x + m - 1) // m) * m


def _expand_kernel(loc_ref, q_ref, out_ref, *, n_src_rows: int):
    """Grid = (output-time tiles, output-column tiles), both parallel.

    loc_ref : VMEM (TT, 1)  int32 -- for each output hour of this tile, the local
                                     source-row slot (0..R-1) inside q_ref.
    q_ref   : VMEM (R, TN)  f32   -- this tile's (contiguous) source rows, columns
                                     already restricted to the selected divides.
    out_ref : VMEM (TT, TN) f32   -- output tile (hours x divides); written once.
    """
    loc = loc_ref[...]                                       # (TT, 1)
    # Row 0 is the base; remaining rows overwrite via masked selects. Every output
    # hour's loc is in [0, span) <= n_src_rows, so all rows are covered -> no init,
    # no read-modify-write of out_ref, single lane-dense store.
    acc = jnp.broadcast_to(q_ref[0:1, :], out_ref.shape)     # (TT, TN)
    for r in range(1, n_src_rows):
        acc = jnp.where(loc == r, q_ref[r:r + 1, :], acc)
    out_ref[...] = acc


def streamflow_forward(
    q_src,                     # (T_all, N_total): ds['Qr'].values, dims (time, divide_id)
    src_times,                 # (T_all,) numeric time coordinate of the dataset
    divide_ids_ds,             # (N_total,) ds.divide_id.values
    divide_ids_basin,          # (M,) hydrofabric.divide_ids
    numerical_time_range,      # (T_src,) integer isel indices into the time axis
    batch_hourly_time_range,   # (T_out,) target (hourly) numeric times
    *,
    time_tile: int = 384,      # output hours per tile (rounded to a multiple of 24)
    col_tile: int = 1024,      # output divides per tile (multiple of 128)
):
    """JAX/Pallas equivalent of StreamflowReader.forward (data already in memory)."""
    # TODO(synk): the zarr/icechunk I/O (read_ic) and xarray lazy-dataset handling have
    # no Pallas equivalent; `q_src` stands in for the already-loaded ds['Qr'].

    # ---------------- host-side (numpy) index preparation -----------------
    # Divide selection exactly as the module (np.isin -> np.where): rows come out in
    # *dataset* order, and basin ids absent from the dataset are dropped, matching
    # the original .isel(divide_id=divide_indices) semantics.
    divide_ids_ds = np.asarray(divide_ids_ds)
    divide_indices = np.where(np.isin(divide_ids_ds, np.asarray(divide_ids_basin)))[0]
    divide_indices = divide_indices.astype(np.int32)
    n_sel = int(divide_indices.shape[0])
    if n_sel == 0:
        raise IndexError("none of the requested divide_ids exist in the dataset")

    ntr = np.asarray(numerical_time_range).astype(np.int64)
    sel_times = np.asarray(src_times)[ntr]                        # (T_src,)
    tgt = np.asarray(batch_hourly_time_range)                     # (T_out,)
    # Nearest-neighbour indices (local to the window); exact ties take the lower
    # index, matching scipy.interpolate.interp1d(kind='nearest') used by xarray.interp.
    nearest = np.argmin(np.abs(tgt[None, :] - sel_times[:, None]), axis=0)  # (T_out,)
    # xarray.interp fills targets outside the selected window with NaN.
    oob = (tgt < sel_times.min()) | (tgt > sel_times.max())

    t_src = int(ntr.shape[0])
    t_out = int(tgt.shape[0])

    # Output tiling: lane-dense columns (multiple of 128), day-multiple time tiles.
    n_sel_pad = _round_up(n_sel, 128)
    if n_sel_pad > col_tile:
        n_sel_pad = _round_up(n_sel_pad, col_tile)
        tn = col_tile
    else:
        tn = n_sel_pad
    n_col_tiles = n_sel_pad // tn

    tt = _round_up(max(int(time_tile), 24), 24)
    tt = min(tt, _round_up(t_out, 24))                 # don't over-tile short horizons
    t_out_pad = _round_up(t_out, tt)
    n_tiles = t_out_pad // tt

    # Per output-time tile: contiguous range of window rows it touches.
    nearest_pad = np.concatenate(
        [nearest, np.full(t_out_pad - t_out, nearest[-1], dtype=nearest.dtype)]
    ).reshape(n_tiles, tt)
    lo = nearest_pad.min(axis=1).astype(np.int64)                  # (n_tiles,)
    span = nearest_pad.max(axis=1) - lo + 1
    n_src_rows = int(_round_up(int(span.max()), 8))                # R (sublane aligned)
    loc = (nearest_pad - lo[:, None]).astype(np.int32).reshape(t_out_pad, 1)

    # ---------------- device-side pre-gather (plain XLA, tiny) ----------------
    # Only the window rows x selected columns are ever cast / copied.
    q_src_d = jnp.asarray(q_src)
    q_sel = jnp.take(
        jnp.take(q_src_d, jnp.asarray(ntr), axis=0),
        jnp.asarray(divide_indices), axis=1,
    ).astype(jnp.float32)                                          # (T_src, n_sel)
    q_sel = jnp.pad(q_sel, ((0, n_src_rows), (0, n_sel_pad - n_sel)))
    gather_rows = jnp.asarray(lo[:, None] + np.arange(n_src_rows)[None, :])
    q_blocks = jnp.take(q_sel, gather_rows.reshape(-1), axis=0).reshape(
        n_tiles, n_src_rows, n_sel_pad
    )                                                              # (n_tiles, R, n_sel_pad)
    loc_d = jnp.asarray(loc)                                       # (t_out_pad, 1)

    # ---------------- Pallas kernel: hourly expansion ----------------
    out_pad = pl.pallas_call(
        functools.partial(_expand_kernel, n_src_rows=n_src_rows),
        out_shape=jax.ShapeDtypeStruct((t_out_pad, n_sel_pad), jnp.float32),
        grid=(n_tiles, n_col_tiles),
        in_specs=[
            pl.BlockSpec((tt, 1), lambda j, c: (j, 0)),
            pl.BlockSpec((None, n_src_rows, tn), lambda j, c: (j, 0, c)),
        ],
        out_specs=pl.BlockSpec((tt, tn), lambda j, c: (j, c)),
        compiler_params=pltpu.CompilerParams(
            dimension_semantics=("parallel", "parallel")
        ),
    )(loc_d, q_blocks)

    streamflow = out_pad[:t_out, :n_sel]                           # (T_out, N_sel)
    if bool(np.any(oob)):
        streamflow = jnp.where(jnp.asarray(oob)[:, None], jnp.nan, streamflow)
    # final transpose, matching `.values.astype(np.float32).T` in the module
    return {"streamflow": streamflow.T}


if __name__ == "__main__":
    key = jax.random.PRNGKey(0)

    # small synthetic dataset: 32 daily timesteps, 128 divides total
    T_all, N_total = 32, 128
    q_src = jax.random.normal(key, (T_all, N_total), dtype=jnp.float32)
    src_times = np.arange(T_all, dtype=np.float64) * 24.0          # hours, daily cadence
    divide_ids_ds = np.arange(1000, 1000 + N_total)

    # hydrofabric: 96 selected divides (arbitrary order), a 10-day window,
    # 192 hourly targets inside the window
    rng = np.random.RandomState(0)
    sel_cols = np.sort(rng.choice(N_total, size=96, replace=False))
    divide_ids_basin = rng.permutation(divide_ids_ds[sel_cols])
    numerical_time_range = np.arange(4, 14)                        # T_src = 10
    batch_hourly_time_range = src_times[5] + np.arange(192, dtype=np.float64)

    result = streamflow_forward(
        q_src, src_times, divide_ids_ds, divide_ids_basin,
        numerical_time_range, batch_hourly_time_range,
    )["streamflow"]
    jax.block_until_ready(result)

    # numpy reference of the module's semantics
    div_idx = np.where(np.isin(divide_ids_ds, divide_ids_basin))[0]
    sel = np.asarray(q_src)[numerical_time_range][:, div_idx]
    sel_t = src_times[numerical_time_range]
    ti = np.argmin(np.abs(batch_hourly_time_range[None, :] - sel_t[:, None]), axis=0)
    ref = sel[ti].T.astype(np.float32)                             # (N_sel, T_out)

    assert result.shape == ref.shape, (result.shape, ref.shape)
    assert result.dtype == jnp.float32
    assert np.allclose(np.asarray(result), ref, atol=1e-6)
    print("KERNEL_OK")
</pallas_src>

<mosaic_0001>
module attributes {stable_mosaic.version = 11 : i64} {
  func.func @_expand_kernel(%arg0: i32, %arg1: i32, %arg2: memref<192x1xi32, #tpu.memory_space<vmem>>, %arg3: memref<1x16x128xf32, #tpu.memory_space<vmem>>, %arg4: memref<192x128xf32, #tpu.memory_space<vmem>>) attributes {dimension_semantics = [#tpu.dimension_semantics<parallel>, #tpu.dimension_semantics<parallel>], iteration_bounds = array<i64: 1, 1>, scalar_prefetch = 0 : i64, scratch_operands = 0 : i64, tpu.core_type = #tpu.core_type<tc>, window_params = [{transform_indices = @transform_0, window_bounds = array<i64: 192, 1>}, {transform_indices = @transform_1, window_bounds = array<i64: 1, 16, 128>}, {transform_indices = @transform_2, window_bounds = array<i64: 192, 128>}]} {
    %c0 = arith.constant 0 : index
    %c0_0 = arith.constant 0 : index
    %0 = vector.load %arg2[%c0, %c0_0] : memref<192x1xi32, #tpu.memory_space<vmem>>, vector<192x1xi32>
    %c0_1 = arith.constant 0 : index
    %c0_2 = arith.constant 0 : index
    %c0_3 = arith.constant 0 : index
    %1 = vector.load %arg3[%c0_1, %c0_2, %c0_3] : memref<1x16x128xf32, #tpu.memory_space<vmem>>, vector<1x1x128xf32>
    %2 = vector.shape_cast %1 : vector<1x1x128xf32> to vector<1x128xf32>
    %3 = vector.shape_cast %2 : vector<1x128xf32> to vector<1x128xf32>
    %4 = vector.broadcast %3 : vector<1x128xf32> to vector<192x128xf32>
    %c1_i32 = arith.constant 1 : i32
    %5 = vector.broadcast %c1_i32 : i32 to vector<192x1xi32>
    %6 = arith.cmpi eq, %0, %5 : vector<192x1xi32>
    %c0_4 = arith.constant 0 : index
    %c1 = arith.constant 1 : index
    %c0_5 = arith.constant 0 : index
    %7 = vector.load %arg3[%c0_4, %c1, %c0_5] : memref<1x16x128xf32, #tpu.memory_space<vmem>>, vector<1x1x128xf32>
    %8 = vector.shape_cast %7 : vector<1x1x128xf32> to vector<1x128xf32>
    %9 = vector.shape_cast %6 : vector<192x1xi1> to vector<192x1xi1>
    %10 = vector.broadcast %9 : vector<192x1xi1> to vector<192x128xi1>
    %11 = vector.shape_cast %8 : vector<1x128xf32> to vector<1x128xf32>
    %12 = vector.broadcast %11 : vector<1x128xf32> to vector<192x128xf32>
    %13 = arith.select %10, %12, %4 : vector<192x128xi1>, vector<192x128xf32>
    %c2_i32 = arith.constant 2 : i32
    %14 = vector.broadcast %c2_i32 : i32 to vector<192x1xi32>
    %15 = arith.cmpi eq, %0, %14 : vector<192x1xi32>
    %c0_6 = arith.constant 0 : index
    %c2 = arith.constant 2 : index
    %c0_7 = arith.constant 0 : index
    %16 = vector.load %arg3[%c0_6, %c2, %c0_7] : memref<1x16x128xf32, #tpu.memory_space<vmem>>, vector<1x1x128xf32>
    %17 = vector.shape_cast %16 : vector<1x1x128xf32> to vector<1x128xf32>
    %18 = vector.shape_cast %15 : vector<192x1xi1> to vector<192x1xi1>
    %19 = vector.broadcast %18 : vector<192x1xi1> to vector<192x128xi1>
    %20 = vector.shape_cast %17 : vector<1x128xf32> to vector<1x128xf32>
    %21 = vector.broadcast %20 : vector<1x128xf32> to vector<192x128xf32>
    %22 = arith.select %19, %21, %13 : vector<192x128xi1>, vector<192x128xf32>
    %c3_i32 = arith.constant 3 : i32
    %23 = vector.broadcast %c3_i32 : i32 to vector<192x1xi32>
    %24 = arith.cmpi eq, %0, %23 : vector<192x1xi32>
    %c0_8 = arith.constant 0 : index
    %c3 = arith.constant 3 : index
    %c0_9 = arith.constant 0 : index
    %25 = vector.load %arg3[%c0_8, %c3, %c0_9] : memref<1x16x128xf32, #tpu.memory_space<vmem>>, vector<1x1x128xf32>
    %26 = vector.shape_cast %25 : vector<1x1x128xf32> to vector<1x128xf32>
    %27 = vector.shape_cast %24 : vector<192x1xi1> to vector<192x1xi1>
    %28 = vector.broadcast %27 : vector<192x1xi1> to vector<192x128xi1>
    %29 = vector.shape_cast %26 : vector<1x128xf32> to vector<1x128xf32>
    %30 = vector.broadcast %29 : vector<1x128xf32> to vector<192x128xf32>
    %31 = arith.select %28, %30, %22 : vector<192x128xi1>, vector<192x128xf32>
    %c4_i32 = arith.constant 4 : i32
    %32 = vector.broadcast %c4_i32 : i32 to vector<192x1xi32>
    %33 = arith.cmpi eq, %0, %32 : vector<192x1xi32>
    %c0_10 = arith.constant 0 : index
    %c4 = arith.constant 4 : index
    %c0_11 = arith.constant 0 : index
    %34 = vector.load %arg3[%c0_10, %c4, %c0_11] : memref<1x16x128xf32, #tpu.memory_space<vmem>>, vector<1x1x128xf32>
    %35 = vector.shape_cast %34 : vector<1x1x128xf32> to vector<1x128xf32>
    %36 = vector.shape_cast %33 : vector<192x1xi1> to vector<192x1xi1>
    %37 = vector.broadcast %36 : vector<192x1xi1> to vector<192x128xi1>
    %38 = vector.shape_cast %35 : vector<1x128xf32> to vector<1x128xf32>
    %39 = vector.broadcast %38 : vector<1x128xf32> to vector<192x128xf32>
    %40 = arith.select %37, %39, %31 : vector<192x128xi1>, vector<192x128xf32>
    %c5_i32 = arith.constant 5 : i32
    %41 = vector.broadcast %c5_i32 : i32 to vector<192x1xi32>
    %42 = arith.cmpi eq, %0, %41 : vector<192x1xi32>
    %c0_12 = arith.constant 0 : index
    %c5 = arith.constant 5 : index
    %c0_13 = arith.constant 0 : index
    %43 = vector.load %arg3[%c0_12, %c5, %c0_13] : memref<1x16x128xf32, #tpu.memory_space<vmem>>, vector<1x1x128xf32>
    %44 = vector.shape_cast %43 : vector<1x1x128xf32> to vector<1x128xf32>
    %45 = vector.shape_cast %42 : vector<192x1xi1> to vector<192x1xi1>
    %46 = vector.broadcast %45 : vector<192x1xi1> to vector<192x128xi1>
    %47 = vector.shape_cast %44 : vector<1x128xf32> to vector<1x128xf32>
    %48 = vector.broadcast %47 : vector<1x128xf32> to vector<192x128xf32>
    %49 = arith.select %46, %48, %40 : vector<192x128xi1>, vector<192x128xf32>
    %c6_i32 = arith.constant 6 : i32
    %50 = vector.broadcast %c6_i32 : i32 to vector<192x1xi32>
    %51 = arith.cmpi eq, %0, %50 : vector<192x1xi32>
    %c0_14 = arith.constant 0 : index
    %c6 = arith.constant 6 : index
    %c0_15 = arith.constant 0 : index
    %52 = vector.load %arg3[%c0_14, %c6, %c0_15] : memref<1x16x128xf32, #tpu.memory_space<vmem>>, vector<1x1x128xf32>
    %53 = vector.shape_cast %52 : vector<1x1x128xf32> to vector<1x128xf32>
    %54 = vector.shape_cast %51 : vector<192x1xi1> to vector<192x1xi1>
    %55 = vector.broadcast %54 : vector<192x1xi1> to vector<192x128xi1>
    %56 = vector.shape_cast %53 : vector<1x128xf32> to vector<1x128xf32>
    %57 = vector.broadcast %56 : vector<1x128xf32> to vector<192x128xf32>
    %58 = arith.select %55, %57, %49 : vector<192x128xi1>, vector<192x128xf32>
    %c7_i32 = arith.constant 7 : i32
    %59 = vector.broadcast %c7_i32 : i32 to vector<192x1xi32>
    %60 = arith.cmpi eq, %0, %59 : vector<192x1xi32>
    %c0_16 = arith.constant 0 : index
    %c7 = arith.constant 7 : index
    %c0_17 = arith.constant 0 : index
    %61 = vector.load %arg3[%c0_16, %c7, %c0_17] : memref<1x16x128xf32, #tpu.memory_space<vmem>>, vector<1x1x128xf32>
    %62 = vector.shape_cast %61 : vector<1x1x128xf32> to vector<1x128xf32>
    %63 = vector.shape_cast %60 : vector<192x1xi1> to vector<192x1xi1>
    %64 = vector.broadcast %63 : vector<192x1xi1> to vector<192x128xi1>
    %65 = vector.shape_cast %62 : vector<1x128xf32> to vector<1x128xf32>
    %66 = vector.broadcast %65 : vector<1x128xf32> to vector<192x128xf32>
    %67 = arith.select %64, %66, %58 : vector<192x128xi1>, vector<192x128xf32>
    %c8_i32 = arith.constant 8 : i32
    %68 = vector.broadcast %c8_i32 : i32 to vector<192x1xi32>
    %69 = arith.cmpi eq, %0, %68 : vector<192x1xi32>
    %c0_18 = arith.constant 0 : index
    %c8 = arith.constant 8 : index
    %c0_19 = arith.constant 0 : index
    %70 = vector.load %arg3[%c0_18, %c8, %c0_19] : memref<1x16x128xf32, #tpu.memory_space<vmem>>, vector<1x1x128xf32>
    %71 = vector.shape_cast %70 : vector<1x1x128xf32> to vector<1x128xf32>
    %72 = vector.shape_cast %69 : vector<192x1xi1> to vector<192x1xi1>
    %73 = vector.broadcast %72 : vector<192x1xi1> to vector<192x128xi1>
    %74 = vector.shape_cast %71 : vector<1x128xf32> to vector<1x128xf32>
    %75 = vector.broadcast %74 : vector<1x128xf32> to vector<192x128xf32>
    %76 = arith.select %73, %75, %67 : vector<192x128xi1>, vector<192x128xf32>
    %c9_i32 = arith.constant 9 : i32
    %77 = vector.broadcast %c9_i32 : i32 to vector<192x1xi32>
    %78 = arith.cmpi eq, %0, %77 : vector<192x1xi32>
    %c0_20 = arith.constant 0 : index
    %c9 = arith.constant 9 : index
    %c0_21 = arith.constant 0 : index
    %79 = vector.load %arg3[%c0_20, %c9, %c0_21] : memref<1x16x128xf32, #tpu.memory_space<vmem>>, vector<1x1x128xf32>
    %80 = vector.shape_cast %79 : vector<1x1x128xf32> to vector<1x128xf32>
    %81 = vector.shape_cast %78 : vector<192x1xi1> to vector<192x1xi1>
    %82 = vector.broadcast %81 : vector<192x1xi1> to vector<192x128xi1>
    %83 = vector.shape_cast %80 : vector<1x128xf32> to vector<1x128xf32>
    %84 = vector.broadcast %83 : vector<1x128xf32> to vector<192x128xf32>
    %85 = arith.select %82, %84, %76 : vector<192x128xi1>, vector<192x128xf32>
    %c10_i32 = arith.constant 10 : i32
    %86 = vector.broadcast %c10_i32 : i32 to vector<192x1xi32>
    %87 = arith.cmpi eq, %0, %86 : vector<192x1xi32>
    %c0_22 = arith.constant 0 : index
    %c10 = arith.constant 10 : index
    %c0_23 = arith.constant 0 : index
    %88 = vector.load %arg3[%c0_22, %c10, %c0_23] : memref<1x16x128xf32, #tpu.memory_space<vmem>>, vector<1x1x128xf32>
    %89 = vector.shape_cast %88 : vector<1x1x128xf32> to vector<1x128xf32>
    %90 = vector.shape_cast %87 : vector<192x1xi1> to vector<192x1xi1>
    %91 = vector.broadcast %90 : vector<192x1xi1> to vector<192x128xi1>
    %92 = vector.shape_cast %89 : vector<1x128xf32> to vector<1x128xf32>
    %93 = vector.broadcast %92 : vector<1x128xf32> to vector<192x128xf32>
    %94 = arith.select %91, %93, %85 : vector<192x128xi1>, vector<192x128xf32>
    %c11_i32 = arith.constant 11 : i32
    %95 = vector.broadcast %c11_i32 : i32 to vector<192x1xi32>
    %96 = arith.cmpi eq, %0, %95 : vector<192x1xi32>
    %c0_24 = arith.constant 0 : index
    %c11 = arith.constant 11 : index
    %c0_25 = arith.constant 0 : index
    %97 = vector.load %arg3[%c0_24, %c11, %c0_25] : memref<1x16x128xf32, #tpu.memory_space<vmem>>, vector<1x1x128xf32>
    %98 = vector.shape_cast %97 : vector<1x1x128xf32> to vector<1x128xf32>
    %99 = vector.shape_cast %96 : vector<192x1xi1> to vector<192x1xi1>
    %100 = vector.broadcast %99 : vector<192x1xi1> to vector<192x128xi1>
    %101 = vector.shape_cast %98 : vector<1x128xf32> to vector<1x128xf32>
    %102 = vector.broadcast %101 : vector<1x128xf32> to vector<192x128xf32>
    %103 = arith.select %100, %102, %94 : vector<192x128xi1>, vector<192x128xf32>
    %c12_i32 = arith.constant 12 : i32
    %104 = vector.broadcast %c12_i32 : i32 to vector<192x1xi32>
    %105 = arith.cmpi eq, %0, %104 : vector<192x1xi32>
    %c0_26 = arith.constant 0 : index
    %c12 = arith.constant 12 : index
    %c0_27 = arith.constant 0 : index
    %106 = vector.load %arg3[%c0_26, %c12, %c0_27] : memref<1x16x128xf32, #tpu.memory_space<vmem>>, vector<1x1x128xf32>
    %107 = vector.shape_cast %106 : vector<1x1x128xf32> to vector<1x128xf32>
    %108 = vector.shape_cast %105 : vector<192x1xi1> to vector<192x1xi1>
    %109 = vector.broadcast %108 : vector<192x1xi1> to vector<192x128xi1>
    %110 = vector.shape_cast %107 : vector<1x128xf32> to vector<1x128xf32>
    %111 = vector.broadcast %110 : vector<1x128xf32> to vector<192x128xf32>
    %112 = arith.select %109, %111, %103 : vector<192x128xi1>, vector<192x128xf32>
    %c13_i32 = arith.constant 13 : i32
    %113 = vector.broadcast %c13_i32 : i32 to vector<192x1xi32>
    %114 = arith.cmpi eq, %0, %113 : vector<192x1xi32>
    %c0_28 = arith.constant 0 : index
    %c13 = arith.constant 13 : index
    %c0_29 = arith.constant 0 : index
    %115 = vector.load %arg3[%c0_28, %c13, %c0_29] : memref<1x16x128xf32, #tpu.memory_space<vmem>>, vector<1x1x128xf32>
    %116 = vector.shape_cast %115 : vector<1x1x128xf32> to vector<1x128xf32>
    %117 = vector.shape_cast %114 : vector<192x1xi1> to vector<192x1xi1>
    %118 = vector.broadcast %117 : vector<192x1xi1> to vector<192x128xi1>
    %119 = vector.shape_cast %116 : vector<1x128xf32> to vector<1x128xf32>
    %120 = vector.broadcast %119 : vector<1x128xf32> to vector<192x128xf32>
    %121 = arith.select %118, %120, %112 : vector<192x128xi1>, vector<192x128xf32>
    %c14_i32 = arith.constant 14 : i32
    %122 = vector.broadcast %c14_i32 : i32 to vector<192x1xi32>
    %123 = arith.cmpi eq, %0, %122 : vector<192x1xi32>
    %c0_30 = arith.constant 0 : index
    %c14 = arith.constant 14 : index
    %c0_31 = arith.constant 0 : index
    %124 = vector.load %arg3[%c0_30, %c14, %c0_31] : memref<1x16x128xf32, #tpu.memory_space<vmem>>, vector<1x1x128xf32>
    %125 = vector.shape_cast %124 : vector<1x1x128xf32> to vector<1x128xf32>
    %126 = vector.shape_cast %123 : vector<192x1xi1> to vector<192x1xi1>
    %127 = vector.broadcast %126 : vector<192x1xi1> to vector<192x128xi1>
    %128 = vector.shape_cast %125 : vector<1x128xf32> to vector<1x128xf32>
    %129 = vector.broadcast %128 : vector<1x128xf32> to vector<192x128xf32>
    %130 = arith.select %127, %129, %121 : vector<192x128xi1>, vector<192x128xf32>
    %c15_i32 = arith.constant 15 : i32
    %131 = vector.broadcast %c15_i32 : i32 to vector<192x1xi32>
    %132 = arith.cmpi eq, %0, %131 : vector<192x1xi32>
    %c0_32 = arith.constant 0 : index
    %c15 = arith.constant 15 : index
    %c0_33 = arith.constant 0 : index
    %133 = vector.load %arg3[%c0_32, %c15, %c0_33] : memref<1x16x128xf32, #tpu.memory_space<vmem>>, vector<1x1x128xf32>
    %134 = vector.shape_cast %133 : vector<1x1x128xf32> to vector<1x128xf32>
    %135 = vector.shape_cast %132 : vector<192x1xi1> to vector<192x1xi1>
    %136 = vector.broadcast %135 : vector<192x1xi1> to vector<192x128xi1>
    %137 = vector.shape_cast %134 : vector<1x128xf32> to vector<1x128xf32>
    %138 = vector.broadcast %137 : vector<1x128xf32> to vector<192x128xf32>
    %139 = arith.select %136, %138, %130 : vector<192x128xi1>, vector<192x128xf32>
    %c0_34 = arith.constant 0 : index
    %c0_35 = arith.constant 0 : index
    %140 = vector.load %arg4[%c0_34, %c0_35] : memref<192x128xf32, #tpu.memory_space<vmem>>, vector<192x128xf32>
    tpu.vector_store %arg4[%c0_34, %c0_35], %139 {strides = array<i32>} : memref<192x128xf32, #tpu.memory_space<vmem>>, vector<192x128xf32>,
    return
  }
  func.func @transform_0(%arg0: i32, %arg1: i32) -> (i32, i32) {
    %c0_i32 = arith.constant 0 : i32
    %c0_i32_0 = arith.constant 0 : i32
    return %arg0, %c0_i32 : i32, i32
  }
  func.func @transform_1(%arg0: i32, %arg1: i32) -> (i32, i32, i32) {
    %c0_i32 = arith.constant 0 : i32
    %c0_i32_0 = arith.constant 0 : i32
    return %arg0, %c0_i32, %arg1 : i32, i32, i32
  }
  func.func @transform_2(%arg0: i32, %arg1: i32) -> (i32, i32) {
    %c0_i32 = arith.constant 0 : i32
    return %arg0, %arg1 : i32, i32
  }
}

</mosaic_0001>

<llo_original>
// kernel: tpu_custom_call.1
$region0: #{tpu_custom_call.1}
  #allocation0 [shape = 'u32[]', space=smem, size = 0x4, offset = 0x4, fixed_abs, tag = 'smem constant byte address 0x4 - core index']
  #allocation1 [shape = 'u32[144,128]{1,0:T(1,128)}', space=vmem, size = 0x12000, scoped, tag = 'internal scratch']
  %s0 = inlined_call_operand.vmem [shape: s32[192,1], index: 0, kind: input, shape index: {}]
  %s1 = inlined_call_operand.vmem [shape: f32[1,16,128], index: 1, kind: input, shape index: {}]
  %s2 = inlined_call_operand.hbm [shape: f32[192,128], index: 2, kind: output, shape index: {}]
  %s3 = sld [smem:[#allocation0]]
  $region18: #{tpu_custom_call.1} parent=0
    _
  %s5 = ssub.s32 1, %s3
  %s6 = scalar_select 0, %s5, %s3
  $region1: #{tpu_custom_call.1} parent=0
    #allocation2 [shape = 'u8[98304]{0}', space=vmem, size = 0x18000, scoped, tag = 'output window, operand 0, single buffered']
    #allocation3 [shape = 's32[1]{0}', space=sflag, size = 0x4, scoped, tag = 'scoped memory for tpu_custom_call.1']
    %7 = vsyncpa [#allocation3], 0
    // Predicated region
    $region2: #{tpu_custom_call.1} parent=1 // pred_check
      _
    $region3: #{tpu_custom_call.1} parent=1 // pred_check_branch
      %9 = sbr.rel (0) target = $region5
    $region4: #{tpu_custom_call.1} parent=1 // pred_region
      _
    $region5: #{tpu_custom_call.1} parent=1 // pred_fallthru
      _
    // Predicated region
    $region6: #{tpu_custom_call.1} parent=1 // pred_check
      _
    $region7: #{tpu_custom_call.1} parent=1 // pred_check_branch
      %11 = sbr.rel (0) target = $region9
    $region8: #{tpu_custom_call.1} parent=1 // pred_region
      _
    $region9: #{tpu_custom_call.1} parent=1 // pred_fallthru
      _
    %v12 = vld [vmem:[%s0] sm:$0xff]
    %v13 = vld [vmem:[%s0 + $0x8] sm:$0xff]
    %v14 = vld [vmem:[%s0 + $0x10] sm:$0xff]
    %v15 = vld [vmem:[%s0 + $0x18] sm:$0xff]
    %v16 = vld [vmem:[%s0 + $0x20] sm:$0xff]
    %v17 = vld [vmem:[%s0 + $0x28] sm:$0xff]
    %v18 = vld [vmem:[%s0 + $0x30] sm:$0xff]
    %v19 = vld [vmem:[%s0 + $0x38] sm:$0xff]
    %v20 = vld [vmem:[%s0 + $0x40] sm:$0xff]
    %v21 = vld [vmem:[%s0 + $0x48] sm:$0xff]
    %v22 = vld [vmem:[%s0 + $0x50] sm:$0xff]
    %v23 = vld [vmem:[%s0 + $0x58] sm:$0xff]
    %v24 = vld [vmem:[%s0 + $0x60] sm:$0xff]
    %v25 = vld [vmem:[%s0 + $0x68] sm:$0xff]
    %v26 = vld [vmem:[%s0 + $0x70] sm:$0xff]
    %v27 = vld [vmem:[%s0 + $0x78] sm:$0xff]
    %v28 = vld [vmem:[%s0 + $0x80] sm:$0xff]
    %v29 = vld [vmem:[%s0 + $0x88] sm:$0xff]
    %v30 = vld [vmem:[%s0 + $0x90] sm:$0xff]
    %v31 = vld [vmem:[%s0 + $0x98] sm:$0xff]
    %v32 = vld [vmem:[%s0 + $0xa0] sm:$0xff]
    %v33 = vld [vmem:[%s0 + $0xa8] sm:$0xff]
    %v34 = vld [vmem:[%s0 + $0xb0] sm:$0xff]
    %v35 = vld [vmem:[%s0 + $0xb8] sm:$0xff]
    %v36 = vld [vmem:[%s1] sm:$0x1]
    %v37 = vlaneseq
    %v38 = vshrl.u32 %v37, 7
    %v39 = vsub.s32 0, %v38
    %v40 = vrot.slane %v36, %v39
    %vm41 = vcmp.eq.s32.totalorder %v12, 1
    %vm42 = vcmp.eq.s32.totalorder %v13, 1
    %vm43 = vcmp.eq.s32.totalorder %v14, 1
    %vm44 = vcmp.eq.s32.totalorder %v15, 1
    %vm45 = vcmp.eq.s32.totalorder %v16, 1
    %vm46 = vcmp.eq.s32.totalorder %v17, 1
    %vm47 = vcmp.eq.s32.totalorder %v18, 1
    %vm48 = vcmp.eq.s32.totalorder %v19, 1
    %vm49 = vcmp.eq.s32.totalorder %v20, 1
    %vm50 = vcmp.eq.s32.totalorder %v21, 1
    %vm51 = vcmp.eq.s32.totalorder %v22, 1
    %vm52 = vcmp.eq.s32.totalorder %v23, 1
    %vm53 = vcmp.eq.s32.totalorder %v24, 1
    %vm54 = vcmp.eq.s32.totalorder %v25, 1
    %vm55 = vcmp.eq.s32.totalorder %v26, 1
    %vm56 = vcmp.eq.s32.totalorder %v27, 1
    %vm57 = vcmp.eq.s32.totalorder %v28, 1
    %vm58 = vcmp.eq.s32.totalorder %v29, 1
    %vm59 = vcmp.eq.s32.totalorder %v30, 1
    %vm60 = vcmp.eq.s32.totalorder %v31, 1
    %vm61 = vcmp.eq.s32.totalorder %v32, 1
    %vm62 = vcmp.eq.s32.totalorder %v33, 1
    %vm63 = vcmp.eq.s32.totalorder %v34, 1
    %vm64 = vcmp.eq.s32.totalorder %v35, 1
    %v65 = vld [vmem:[%s1 + $0x1] sm:$0x1]
    %v66 = vsel %vm41, 1, 0
    %v67 = vsel %vm42, 1, 0
    %v68 = vsel %vm43, 1, 0
    %v69 = vsel %vm44, 1, 0
    %v70 = vsel %vm45, 1, 0
    %v71 = vsel %vm46, 1, 0
    %v72 = vsel %vm47, 1, 0
    %v73 = vsel %vm48, 1, 0
    %v74 = vsel %vm49, 1, 0
    %v75 = vsel %vm50, 1, 0
    %v76 = vsel %vm51, 1, 0
    %v77 = vsel %vm52, 1, 0
    %v78 = vsel %vm53, 1, 0
    %v79 = vsel %vm54, 1, 0
    %v80 = vsel %vm55, 1, 0
    %v81 = vsel %vm56, 1, 0
    %v82 = vsel %vm57, 1, 0
    %v83 = vsel %vm58, 1, 0
    %v84 = vsel %vm59, 1, 0
    %v85 = vsel %vm60, 1, 0
    %v86 = vsel %vm61, 1, 0
    %v87 = vsel %vm62, 1, 0
    %v88 = vsel %vm63, 1, 0
    %v89 = vsel %vm64, 1, 0
    %90 = vset.pattern.permute.xlu0 0
    %91 = vperm.xlu0 %90, %v66
    %v92 = vpop.permute.xlu0 %91
    %93 = vset.pattern.permute.xlu0 0
    %94 = vperm.xlu0 %93, %v67
    %v95 = vpop.permute.xlu0 %94
    %96 = vset.pattern.permute.xlu0 0
    %97 = vperm.xlu0 %96, %v68
    %v98 = vpop.permute.xlu0 %97
    %99 = vset.pattern.permute.xlu0 0
    %100 = vperm.xlu0 %99, %v69
    %v101 = vpop.permute.xlu0 %100
    %102 = vset.pattern.permute.xlu0 0
    %103 = vperm.xlu0 %102, %v70
    %v104 = vpop.permute.xlu0 %103
    %105 = vset.pattern.permute.xlu0 0
    %106 = vperm.xlu0 %105, %v71
    %v107 = vpop.permute.xlu0 %106
    %108 = vset.pattern.permute.xlu0 0
    %109 = vperm.xlu0 %108, %v72
    %v110 = vpop.permute.xlu0 %109
    %111 = vset.pattern.permute.xlu0 0
    %112 = vperm.xlu0 %111, %v73
    %v113 = vpop.permute.xlu0 %112
    %114 = vset.pattern.permute.xlu0 0
    %115 = vperm.xlu0 %114, %v74
    %v116 = vpop.permute.xlu0 %115
    %117 = vset.pattern.permute.xlu0 0
    %118 = vperm.xlu0 %117, %v75
    %v119 = vpop.permute.xlu0 %118
    %120 = vset.pattern.permute.xlu0 0
    %121 = vperm.xlu0 %120, %v76
    %v122 = vpop.permute.xlu0 %121
    %123 = vset.pattern.permute.xlu0 0
    %124 = vperm.xlu0 %123, %v77
    %v125 = vpop.permute.xlu0 %124
    %126 = vset.pattern.permute.xlu0 0
    %127 = vperm.xlu0 %126, %v78
    %v128 = vpop.permute.xlu0 %127
    %129 = vset.pattern.permute.xlu0 0
    %130 = vperm.xlu0 %129, %v79
    %v131 = vpop.permute.xlu0 %130
    %132 = vset.pattern.permute.xlu0 0
    %133 = vperm.xlu0 %132, %v80
    %v134 = vpop.permute.xlu0 %133
    %135 = vset.pattern.permute.xlu0 0
    %136 = vperm.xlu0 %135, %v81
    %v137 = vpop.permute.xlu0 %136
    %138 = vset.pattern.permute.xlu0 0
    %139 = vperm.xlu0 %138, %v82
    %v140 = vpop.permute.xlu0 %139
    %141 = vset.pattern.permute.xlu0 0
    %142 = vperm.xlu0 %141, %v83
    %v143 = vpop.permute.xlu0 %142
    %144 = vset.pattern.permute.xlu0 0
    %145 = vperm.xlu0 %144, %v84
    %v146 = vpop.permute.xlu0 %145
    %147 = vset.pattern.permute.xlu0 0
    %148 = vperm.xlu0 %147, %v85
    %v149 = vpop.permute.xlu0 %148
    %150 = vset.pattern.permute.xlu0 0
    %151 = vperm.xlu0 %150, %v86
    %v152 = vpop.permute.xlu0 %151
    %153 = vset.pattern.permute.xlu0 0
    %154 = vperm.xlu0 %153, %v87
    %v155 = vpop.permute.xlu0 %154
    %156 = vset.pattern.permute.xlu0 0
    %157 = vperm.xlu0 %156, %v88
    %v158 = vpop.permute.xlu0 %157
    %159 = vset.pattern.permute.xlu0 0
    %160 = vperm.xlu0 %159, %v89
    %v161 = vpop.permute.xlu0 %160
    %vm162 = vcmp.eq.s32.totalorder %v92, 1
    %vm163 = vcmp.eq.s32.totalorder %v95, 1
    %vm164 = vcmp.eq.s32.totalorder %v98, 1
    %vm165 = vcmp.eq.s32.totalorder %v101, 1
    %vm166 = vcmp.eq.s32.totalorder %v104, 1
    %vm167 = vcmp.eq.s32.totalorder %v107, 1
    %vm168 = vcmp.eq.s32.totalorder %v110, 1
    %vm169 = vcmp.eq.s32.totalorder %v113, 1
    %vm170 = vcmp.eq.s32.totalorder %v116, 1
    %vm171 = vcmp.eq.s32.totalorder %v119, 1
    %vm172 = vcmp.eq.s32.totalorder %v122, 1
    %vm173 = vcmp.eq.s32.totalorder %v125, 1
    %vm174 = vcmp.eq.s32.totalorder %v128, 1
    %vm175 = vcmp.eq.s32.totalorder %v131, 1
    %vm176 = vcmp.eq.s32.totalorder %v134, 1
    %vm177 = vcmp.eq.s32.totalorder %v137, 1
    %vm178 = vcmp.eq.s32.totalorder %v140, 1
    %vm179 = vcmp.eq.s32.totalorder %v143, 1
    %vm180 = vcmp.eq.s32.totalorder %v146, 1
    %vm181 = vcmp.eq.s32.totalorder %v149, 1
    %vm182 = vcmp.eq.s32.totalorder %v152, 1
    %vm183 = vcmp.eq.s32.totalorder %v155, 1
    %vm184 = vcmp.eq.s32.totalorder %v158, 1
    %vm185 = vcmp.eq.s32.totalorder %v161, 1
    %v186 = vlaneseq
    %v187 = vshrl.u32 %v186, 7
    %v188 = vsub.s32 0, %v187
    %v189 = vrot.slane %v65, %v188
    %v190 = vsel %vm162, %v189, %v40
    %v191 = vsel %vm163, %v189, %v40
    %v192 = vsel %vm164, %v189, %v40
    %v193 = vsel %vm165, %v189, %v40
    %v194 = vsel %vm166, %v189, %v40
    %v195 = vsel %vm167, %v189, %v40
    %v196 = vsel %vm168, %v189, %v40
    %v197 = vsel %vm169, %v189, %v40
    %v198 = vsel %vm170, %v189, %v40
    %v199 = vsel %vm171, %v189, %v40
    %v200 = vsel %vm172, %v189, %v40
    %v201 = vsel %vm173, %v189, %v40
    %v202 = vsel %vm174, %v189, %v40
    %v203 = vsel %vm175, %v189, %v40
    %v204 = vsel %vm176, %v189, %v40
    %v205 = vsel %vm177, %v189, %v40
    %v206 = vsel %vm178, %v189, %v40
    %v207 = vsel %vm179, %v189, %v40
    %v208 = vsel %vm180, %v189, %v40
    %v209 = vsel %vm181, %v189, %v40
    %v210 = vsel %vm182, %v189, %v40
    %v211 = vsel %vm183, %v189, %v40
    %v212 = vsel %vm184, %v189, %v40
    %v213 = vsel %vm185, %v189, %v40
    %vm214 = vcmp.eq.s32.totalorder %v12, 2
    %vm215 = vcmp.eq.s32.totalorder %v13, 2
    %vm216 = vcmp.eq.s32.totalorder %v14, 2
    %vm217 = vcmp.eq.s32.totalorder %v15, 2
    %vm218 = vcmp.eq.s32.totalorder %v16, 2
    %vm219 = vcmp.eq.s32.totalorder %v17, 2
    %vm220 = vcmp.eq.s32.totalorder %v18, 2
    %vm221 = vcmp.eq.s32.totalorder %v19, 2
    %vm222 = vcmp.eq.s32.totalorder %v20, 2
    %vm223 = vcmp.eq.s32.totalorder %v21, 2
    %vm224 = vcmp.eq.s32.totalorder %v22, 2
    %vm225 = vcmp.eq.s32.totalorder %v23, 2
    %vm226 = vcmp.eq.s32.totalorder %v24, 2
    %vm227 = vcmp.eq.s32.totalorder %v25, 2
    %vm228 = vcmp.eq.s32.totalorder %v26, 2
    %vm229 = vcmp.eq.s32.totalorder %v27, 2
    %vm230 = vcmp.eq.s32.totalorder %v28, 2
    %vm231 = vcmp.eq.s32.totalorder %v29, 2
    %vm232 = vcmp.eq.s32.totalorder %v30, 2
    %vm233 = vcmp.eq.s32.totalorder %v31, 2
    %vm234 = vcmp.eq.s32.totalorder %v32, 2
    %vm235 = vcmp.eq.s32.totalorder %v33, 2
    %vm236 = vcmp.eq.s32.totalorder %v34, 2
    %vm237 = vcmp.eq.s32.totalorder %v35, 2
    %v238 = vld [vmem:[%s1 + $0x2] sm:$0x1]
    %v239 = vsel %vm214, 1, 0
    %v240 = vsel %vm215, 1, 0
    %v241 = vsel %vm216, 1, 0
    %v242 = vsel %vm217, 1, 0
    %v243 = vsel %vm218, 1, 0
    %v244 = vsel %vm219, 1, 0
    %v245 = vsel %vm220, 1, 0
    %v246 = vsel %vm221, 1, 0
    %v247 = vsel %vm222, 1, 0
    %v248 = vsel %vm223, 1, 0
    %v249 = vsel %vm224, 1, 0
    %v250 = vsel %vm225, 1, 0
    %v251 = vsel %vm226, 1, 0
    %v252 = vsel %vm227, 1, 0
    %v253 = vsel %vm228, 1, 0
    %v254 = vsel %vm229, 1, 0
    %v255 = vsel %vm230, 1, 0
    %v256 = vsel %vm231, 1, 0
    %v257 = vsel %vm232, 1, 0
    %v258 = vsel %vm233, 1, 0
    %v259 = vsel %vm234, 1, 0
    %v260 = vsel %vm235, 1, 0
    %v261 = vsel %vm236, 1, 0
    %v262 = vsel %vm237, 1, 0
    %263 = vset.pattern.permute.xlu0 0
    %264 = vperm.xlu0 %263, %v239
    %v265 = vpop.permute.xlu0 %264
    %266 = vset.pattern.permute.xlu0 0
    %267 = vperm.xlu0 %266, %v240
    %v268 = vpop.permute.xlu0 %267
    %269 = vset.pattern.permute.xlu0 0
    %270 = vperm.xlu0 %269, %v241
    %v271 = vpop.permute.xlu0 %270
    %272 = vset.pattern.permute.xlu0 0
    %273 = vperm.xlu0 %272, %v242
    %v274 = vpop.permute.xlu0 %273
    %275 = vset.pattern.permute.xlu0 0
    %276 = vperm.xlu0 %275, %v243
    %v277 = vpop.permute.xlu0 %276
    %278 = vset.pattern.permute.xlu0 0
    %279 = vperm.xlu0 %278, %v244
    %v280 = vpop.permute.xlu0 %279
    %281 = vset.pattern.permute.xlu0 0
    %282 = vperm.xlu0 %281, %v245
    %v283 = vpop.permute.xlu0 %282
    %284 = vset.pattern.permute.xlu0 0
    %285 = vperm.xlu0 %284, %v246
    %v286 = vpop.permute.xlu0 %285
    %287 = vset.pattern.permute.xlu0 0
    %288 = vperm.xlu0 %287, %v247
    %v289 = vpop.permute.xlu0 %288
    %290 = vset.pattern.permute.xlu0 0
    %291 = vperm.xlu0 %290, %v248
    %v292 = vpop.permute.xlu0 %291
    %293 = vset.pattern.permute.xlu0 0
    %294 = vperm.xlu0 %293, %v249
    %v295 = vpop.permute.xlu0 %294
    %296 = vset.pattern.permute.xlu0 0
    %297 = vperm.xlu0 %296, %v250
    %v298 = vpop.permute.xlu0 %297
    %299 = vset.pattern.permute.xlu0 0
    %300 = vperm.xlu0 %299, %v251
    %v301 = vpop.permute.xlu0 %300
    %302 = vset.pattern.permute.xlu0 0
    %303 = vperm.xlu0 %302, %v252
    %v304 = vpop.permute.xlu0 %303
    %305 = vset.pattern.permute.xlu0 0
    %306 = vperm.xlu0 %305, %v253
    %v307 = vpop.permute.xlu0 %306
    %308 = vset.pattern.permute.xlu0 0
    %309 = vperm.xlu0 %308, %v254
    %v310 = vpop.permute.xlu0 %309
    %311 = vset.pattern.permute.xlu0 0
    %312 = vperm.xlu0 %311, %v255
    %v313 = vpop.permute.xlu0 %312
    %314 = vset.pattern.permute.xlu0 0
    %315 = vperm.xlu0 %314, %v256
    %v316 = vpop.permute.xlu0 %315
    %317 = vset.pattern.permute.xlu0 0
    %318 = vperm.xlu0 %317, %v257
    %v319 = vpop.permute.xlu0 %318
    %320 = vset.pattern.permute.xlu0 0
    %321 = vperm.xlu0 %320, %v258
    %v322 = vpop.permute.xlu0 %321
    %323 = vset.pattern.permute.xlu0 0
    %324 = vperm.xlu0 %323, %v259
    %v325 = vpop.permute.xlu0 %324
    %326 = vset.pattern.permute.xlu0 0
    %327 = vperm.xlu0 %326, %v260
    %v328 = vpop.permute.xlu0 %327
    %329 = vset.pattern.permute.xlu0 0
    %330 = vperm.xlu0 %329, %v261
    %v331 = vpop.permute.xlu0 %330
    %332 = vset.pattern.permute.xlu0 0
    %333 = vperm.xlu0 %332, %v262
    %v334 = vpop.permute.xlu0 %333
    %vm335 = vcmp.eq.s32.totalorder %v265, 1
    %vm336 = vcmp.eq.s32.totalorder %v268, 1
    %vm337 = vcmp.eq.s32.totalorder %v271, 1
    %vm338 = vcmp.eq.s32.totalorder %v274, 1
    %vm339 = vcmp.eq.s32.totalorder %v277, 1
    %vm340 = vcmp.eq.s32.totalorder %v280, 1
    %vm341 = vcmp.eq.s32.totalorder %v283, 1
    %vm342 = vcmp.eq.s32.totalorder %v286, 1
    %vm343 = vcmp.eq.s32.totalorder %v289, 1
    %vm344 = vcmp.eq.s32.totalorder %v292, 1
    %vm345 = vcmp.eq.s32.totalorder %v295, 1
    %vm346 = vcmp.eq.s32.totalorder %v298, 1
    %vm347 = vcmp.eq.s32.totalorder %v301, 1
    %vm348 = vcmp.eq.s32.totalorder %v304, 1
    %vm349 = vcmp.eq.s32.totalorder %v307, 1
    %vm350 = vcmp.eq.s32.totalorder %v310, 1
    %vm351 = vcmp.eq.s32.totalorder %v313, 1
    %vm352 = vcmp.eq.s32.totalorder %v316, 1
    %vm353 = vcmp.eq.s32.totalorder %v319, 1
    %vm354 = vcmp.eq.s32.totalorder %v322, 1
    %vm355 = vcmp.eq.s32.totalorder %v325, 1
    %vm356 = vcmp.eq.s32.totalorder %v328, 1
    %vm357 = vcmp.eq.s32.totalorder %v331, 1
    %vm358 = vcmp.eq.s32.totalorder %v334, 1
    %v359 = vlaneseq
    %v360 = vshrl.u32 %v359, 7
    %v361 = vsub.s32 0, %v360
    %v362 = vrot.slane %v238, %v361
    %v363 = vsel %vm335, %v362, %v190
    %v364 = vsel %vm336, %v362, %v191
    %v365 = vsel %vm337, %v362, %v192
    %v366 = vsel %vm338, %v362, %v193
    %v367 = vsel %vm339, %v362, %v194
    %v368 = vsel %vm340, %v362, %v195
    %v369 = vsel %vm341, %v362, %v196
    %v370 = vsel %vm342, %v362, %v197
    %v371 = vsel %vm343, %v362, %v198
    %v372 = vsel %vm344, %v362, %v199
    %v373 = vsel %vm345, %v362, %v200
    %v374 = vsel %vm346, %v362, %v201
    %v375 = vsel %vm347, %v362, %v202
    %v376 = vsel %vm348, %v362, %v203
    %v377 = vsel %vm349, %v362, %v204
    %v378 = vsel %vm350, %v362, %v205
    %v379 = vsel %vm351, %v362, %v206
    %v380 = vsel %vm352, %v362, %v207
    %v381 = vsel %vm353, %v362, %v208
    %v382 = vsel %vm354, %v362, %v209
    %v383 = vsel %vm355, %v362, %v210
    %v384 = vsel %vm356, %v362, %v211
    %v385 = vsel %vm357, %v362, %v212
    %v386 = vsel %vm358, %v362, %v213
    %vm387 = vcmp.eq.s32.totalorder %v12, 3
    %vm388 = vcmp.eq.s32.totalorder %v13, 3
    %vm389 = vcmp.eq.s32.totalorder %v14, 3
    %vm390 = vcmp.eq.s32.totalorder %v15, 3
    %vm391 = vcmp.eq.s32.totalorder %v16, 3
    %vm392 = vcmp.eq.s32.totalorder %v17, 3
    %vm393 = vcmp.eq.s32.totalorder %v18, 3
    %vm394 = vcmp.eq.s32.totalorder %v19, 3
    %vm395 = vcmp.eq.s32.totalorder %v20, 3
    %vm396 = vcmp.eq.s32.totalorder %v21, 3
    %vm397 = vcmp.eq.s32.totalorder %v22, 3
    %vm398 = vcmp.eq.s32.totalorder %v23, 3
    %vm399 = vcmp.eq.s32.totalorder %v24, 3
    %vm400 = vcmp.eq.s32.totalorder %v25, 3
    %vm401 = vcmp.eq.s32.totalorder %v26, 3
    %vm402 = vcmp.eq.s32.totalorder %v27, 3
    %vm403 = vcmp.eq.s32.totalorder %v28, 3
    %vm404 = vcmp.eq.s32.totalorder %v29, 3
    %vm405 = vcmp.eq.s32.totalorder %v30, 3
    %vm406 = vcmp.eq.s32.totalorder %v31, 3
    %vm407 = vcmp.eq.s32.totalorder %v32, 3
    %vm408 = vcmp.eq.s32.totalorder %v33, 3
    %vm409 = vcmp.eq.s32.totalorder %v34, 3
    %vm410 = vcmp.eq.s32.totalorder %v35, 3
    %v411 = vld [vmem:[%s1 + $0x3] sm:$0x1]
    %v412 = vsel %vm387, 1, 0
    %v413 = vsel %vm388, 1, 0
    %v414 = vsel %vm389, 1, 0
    %v415 = vsel %vm390, 1, 0
    %v416 = vsel %vm391, 1, 0
    %v417 = vsel %vm392, 1, 0
    %v418 = vsel %vm393, 1, 0
    %v419 = vsel %vm394, 1, 0
    %v420 = vsel %vm395, 1, 0
    %v421 = vsel %vm396, 1, 0
    %v422 = vsel %vm397, 1, 0
    %v423 = vsel %vm398, 1, 0
    %v424 = vsel %vm399, 1, 0
    %v425 = vsel %vm400, 1, 0
    %v426 = vsel %vm401, 1, 0
    %v427 = vsel %vm402, 1, 0
    %v428 = vsel %vm403, 1, 0
    %v429 = vsel %vm404, 1, 0
    %v430 = vsel %vm405, 1, 0
    %v431 = vsel %vm406, 1, 0
    %v432 = vsel %vm407, 1, 0
    %v433 = vsel %vm408, 1, 0
    %v434 = vsel %vm409, 1, 0
    %v435 = vsel %vm410, 1, 0
    %436 = vset.pattern.permute.xlu0 0
    %437 = vperm.xlu0 %436, %v412
    %v438 = vpop.permute.xlu0 %437
    %439 = vset.pattern.permute.xlu0 0
    %440 = vperm.xlu0 %439, %v413
    %v441 = vpop.permute.xlu0 %440
    %442 = vset.pattern.permute.xlu0 0
    %443 = vperm.xlu0 %442, %v414
    %v444 = vpop.permute.xlu0 %443
    %445 = vset.pattern.permute.xlu0 0
    %446 = vperm.xlu0 %445, %v415
    %v447 = vpop.permute.xlu0 %446
    %448 = vset.pattern.permute.xlu0 0
    %449 = vperm.xlu0 %448, %v416
    %v450 = vpop.permute.xlu0 %449
    %451 = vset.pattern.permute.xlu0 0
    %452 = vperm.xlu0 %451, %v417
    %v453 = vpop.permute.xlu0 %452
    %454 = vset.pattern.permute.xlu0 0
    %455 = vperm.xlu0 %454, %v418
    %v456 = vpop.permute.xlu0 %455
    %457 = vset.pattern.permute.xlu0 0
    %458 = vperm.xlu0 %457, %v419
    %v459 = vpop.permute.xlu0 %458
    %460 = vset.pattern.permute.xlu0 0
    %461 = vperm.xlu0 %460, %v420
    %v462 = vpop.permute.xlu0 %461
    %463 = vset.pattern.permute.xlu0 0
    %464 = vperm.xlu0 %463, %v421
    %v465 = vpop.permute.xlu0 %464
    %466 = vset.pattern.permute.xlu0 0
    %467 = vperm.xlu0 %466, %v422
    %v468 = vpop.permute.xlu0 %467
    %469 = vset.pattern.permute.xlu0 0
    %470 = vperm.xlu0 %469, %v423
    %v471 = vpop.permute.xlu0 %470
    %472 = vset.pattern.permute.xlu0 0
    %473 = vperm.xlu0 %472, %v424
    %v474 = vpop.permute.xlu0 %473
    %475 = vset.pattern.permute.xlu0 0
    %476 = vperm.xlu0 %475, %v425
    %v477 = vpop.permute.xlu0 %476
    %478 = vset.pattern.permute.xlu0 0
    %479 = vperm.xlu0 %478, %v426
    %v480 = vpop.permute.xlu0 %479
    %481 = vset.pattern.permute.xlu0 0
    %482 = vperm.xlu0 %481, %v427
    %v483 = vpop.permute.xlu0 %482
    %484 = vset.pattern.permute.xlu0 0
    %485 = vperm.xlu0 %484, %v428
    %v486 = vpop.permute.xlu0 %485
    %487 = vset.pattern.permute.xlu0 0
    %488 = vperm.xlu0 %487, %v429
    %v489 = vpop.permute.xlu0 %488
    %490 = vset.pattern.permute.xlu0 0
    %491 = vperm.xlu0 %490, %v430
    %v492 = vpop.permute.xlu0 %491
    %493 = vset.pattern.permute.xlu0 0
    %494 = vperm.xlu0 %493, %v431
    %v495 = vpop.permute.xlu0 %494
    %496 = vset.pattern.permute.xlu0 0
    %497 = vperm.xlu0 %496, %v432
    %v498 = vpop.permute.xlu0 %497
    %499 = vset.pattern.permute.xlu0 0
    %500 = vperm.xlu0 %499, %v433
    %v501 = vpop.permute.xlu0 %500
    %502 = vset.pattern.permute.xlu0 0
    %503 = vperm.xlu0 %502, %v434
    %v504 = vpop.permute.xlu0 %503
    %505 = vset.pattern.permute.xlu0 0
    %506 = vperm.xlu0 %505, %v435
    %v507 = vpop.permute.xlu0 %506
    %vm508 = vcmp.eq.s32.totalorder %v438, 1
    %vm509 = vcmp.eq.s32.totalorder %v441, 1
    %vm510 = vcmp.eq.s32.totalorder %v444, 1
    %vm511 = vcmp.eq.s32.totalorder %v447, 1
    %vm512 = vcmp.eq.s32.totalorder %v450, 1
    %vm513 = vcmp.eq.s32.totalorder %v453, 1
    %vm514 = vcmp.eq.s32.totalorder %v456, 1
    %vm515 = vcmp.eq.s32.totalorder %v459, 1
    %vm516 = vcmp.eq.s32.totalorder %v462, 1
    %vm517 = vcmp.eq.s32.totalorder %v465, 1
    %vm518 = vcmp.eq.s32.totalorder %v468, 1
    %vm519 = vcmp.eq.s32.totalorder %v471, 1
    %vm520 = vcmp.eq.s32.totalorder %v474, 1
    %vm521 = vcmp.eq.s32.totalorder %v477, 1
    %vm522 = vcmp.eq.s32.totalorder %v480, 1
    %vm523 = vcmp.eq.s32.totalorder %v483, 1
    %vm524 = vcmp.eq.s32.totalorder %v486, 1
    %vm525 = vcmp.eq.s32.totalorder %v489, 1
    %vm526 = vcmp.eq.s32.totalorder %v492, 1
    %vm527 = vcmp.eq.s32.totalorder %v495, 1
    %vm528 = vcmp.eq.s32.totalorder %v498, 1
    %vm529 = vcmp.eq.s32.totalorder %v501, 1
    %vm530 = vcmp.eq.s32.totalorder %v504, 1
    %vm531 = vcmp.eq.s32.totalorder %v507, 1
    %v532 = vlaneseq
    %v533 = vshrl.u32 %v532, 7
    %v534 = vsub.s32 0, %v533
    %v535 = vrot.slane %v411, %v534
    %v536 = vsel %vm508, %v535, %v363
    %v537 = vsel %vm509, %v535, %v364
    %v538 = vsel %vm510, %v535, %v365
    %v539 = vsel %vm511, %v535, %v366
    %v540 = vsel %vm512, %v535, %v367
    %v541 = vsel %vm513, %v535, %v368
    %v542 = vsel %vm514, %v535, %v369
    %v543 = vsel %vm515, %v535, %v370
    %v544 = vsel %vm516, %v535, %v371
    %v545 = vsel %vm517, %v535, %v372
    %v546 = vsel %vm518, %v535, %v373
    %v547 = vsel %vm519, %v535, %v374
    %v548 = vsel %vm520, %v535, %v375
    %v549 = vsel %vm521, %v535, %v376
    %v550 = vsel %vm522, %v535, %v377
    %v551 = vsel %vm523, %v535, %v378
    %v552 = vsel %vm524, %v535, %v379
    %v553 = vsel %vm525, %v535, %v380
    %v554 = vsel %vm526, %v535, %v381
    %v555 = vsel %vm527, %v535, %v382
    %v556 = vsel %vm528, %v535, %v383
    %v557 = vsel %vm529, %v535, %v384
    %v558 = vsel %vm530, %v535, %v385
    %v559 = vsel %vm531, %v535, %v386
    %vm560 = vcmp.eq.s32.totalorder %v12, 4
    %vm561 = vcmp.eq.s32.totalorder %v13, 4
    %vm562 = vcmp.eq.s32.totalorder %v14, 4
    %vm563 = vcmp.eq.s32.totalorder %v15, 4
    %vm564 = vcmp.eq.s32.totalorder %v16, 4
    %vm565 = vcmp.eq.s32.totalorder %v17, 4
    %vm566 = vcmp.eq.s32.totalorder %v18, 4
    %vm567 = vcmp.eq.s32.totalorder %v19, 4
    %vm568 = vcmp.eq.s32.totalorder %v20, 4
    %vm569 = vcmp.eq.s32.totalorder %v21, 4
    %vm570 = vcmp.eq.s32.totalorder %v22, 4
    %vm571 = vcmp.eq.s32.totalorder %v23, 4
    %vm572 = vcmp.eq.s32.totalorder %v24, 4
    %vm573 = vcmp.eq.s32.totalorder %v25, 4
    %vm574 = vcmp.eq.s32.totalorder %v26, 4
    %vm575 = vcmp.eq.s32.totalorder %v27, 4
    %vm576 = vcmp.eq.s32.totalorder %v28, 4
    %vm577 = vcmp.eq.s32.totalorder %v29, 4
    %vm578 = vcmp.eq.s32.totalorder %v30, 4
    %vm579 = vcmp.eq.s32.totalorder %v31, 4
    %vm580 = vcmp.eq.s32.totalorder %v32, 4
    %vm581 = vcmp.eq.s32.totalorder %v33, 4
    %vm582 = vcmp.eq.s32.totalorder %v34, 4
    %vm583 = vcmp.eq.s32.totalorder %v35, 4
    %v584 = vld [vmem:[%s1 + $0x4] sm:$0x1]
    %v585 = vsel %vm560, 1, 0
    %v586 = vsel %vm561, 1, 0
    %v587 = vsel %vm562, 1, 0
    %v588 = vsel %vm563, 1, 0
    %v589 = vsel %vm564, 1, 0
    %v590 = vsel %vm565, 1, 0
    %v591 = vsel %vm566, 1, 0
    %v592 = vsel %vm567, 1, 0
    %v593 = vsel %vm568, 1, 0
    %v594 = vsel %vm569, 1, 0
    %v595 = vsel %vm570, 1, 0
    %v596 = vsel %vm571, 1, 0
    %v597 = vsel %vm572, 1, 0
    %v598 = vsel %vm573, 1, 0
    %v599 = vsel %vm574, 1, 0
    %v600 = vsel %vm575, 1, 0
    %v601 = vsel %vm576, 1, 0
    %v602 = vsel %vm577, 1, 0
    %v603 = vsel %vm578, 1, 0
    %v604 = vsel %vm579, 1, 0
    %v605 = vsel %vm580, 1, 0
    %v606 = vsel %vm581, 1, 0
    %v607 = vsel %vm582, 1, 0
    %v608 = vsel %vm583, 1, 0
    %609 = vset.pattern.permute.xlu0 0
    %610 = vperm.xlu0 %609, %v585
    %v611 = vpop.permute.xlu0 %610
    %612 = vset.pattern.permute.xlu0 0
    %613 = vperm.xlu0 %612, %v586
    %v614 = vpop.permute.xlu0 %613
    %615 = vset.pattern.permute.xlu0 0
    %616 = vperm.xlu0 %615, %v587
    %v617 = vpop.permute.xlu0 %616
    %618 = vset.pattern.permute.xlu0 0
    %619 = vperm.xlu0 %618, %v588
    %v620 = vpop.permute.xlu0 %619
    %621 = vset.pattern.permute.xlu0 0
    %622 = vperm.xlu0 %621, %v589
    %v623 = vpop.permute.xlu0 %622
    %624 = vset.pattern.permute.xlu0 0
    %625 = vperm.xlu0 %624, %v590
    %v626 = vpop.permute.xlu0 %625
    %627 = vset.pattern.permute.xlu0 0
    %628 = vperm.xlu0 %627, %v591
    %v629 = vpop.permute.xlu0 %628
    %630 = vset.pattern.permute.xlu0 0
    %631 = vperm.xlu0 %630, %v592
    %v632 = vpop.permute.xlu0 %631
    %633 = vset.pattern.permute.xlu0 0
    %634 = vperm.xlu0 %633, %v593
    %v635 = vpop.permute.xlu0 %634
    %636 = vset.pattern.permute.xlu0 0
    %637 = vperm.xlu0 %636, %v594
    %v638 = vpop.permute.xlu0 %637
    %639 = vset.pattern.permute.xlu0 0
    %640 = vperm.xlu0 %639, %v595
    %v641 = vpop.permute.xlu0 %640
    %642 = vset.pattern.permute.xlu0 0
    %643 = vperm.xlu0 %642, %v596
    %v644 = vpop.permute.xlu0 %643
    %645 = vset.pattern.permute.xlu0 0
    %646 = vperm.xlu0 %645, %v597
    %v647 = vpop.permute.xlu0 %646
    %648 = vset.pattern.permute.xlu0 0
    %649 = vperm.xlu0 %648, %v598
    %v650 = vpop.permute.xlu0 %649
    %651 = vset.pattern.permute.xlu0 0
    %652 = vperm.xlu0 %651, %v599
    %v653 = vpop.permute.xlu0 %652
    %654 = vset.pattern.permute.xlu0 0
    %655 = vperm.xlu0 %654, %v600
    %v656 = vpop.permute.xlu0 %655
    %657 = vset.pattern.permute.xlu0 0
    %658 = vperm.xlu0 %657, %v601
    %v659 = vpop.permute.xlu0 %658
    %660 = vset.pattern.permute.xlu0 0
    %661 = vperm.xlu0 %660, %v602
    %v662 = vpop.permute.xlu0 %661
    %663 = vset.pattern.permute.xlu0 0
    %664 = vperm.xlu0 %663, %v603
    %v665 = vpop.permute.xlu0 %664
    %666 = vset.pattern.permute.xlu0 0
    %667 = vperm.xlu0 %666, %v604
    %v668 = vpop.permute.xlu0 %667
    %669 = vset.pattern.permute.xlu0 0
    %670 = vperm.xlu0 %669, %v605
    %v671 = vpop.permute.xlu0 %670
    %672 = vset.pattern.permute.xlu0 0
    %673 = vperm.xlu0 %672, %v606
    %v674 = vpop.permute.xlu0 %673
    %675 = vset.pattern.permute.xlu0 0
    %676 = vperm.xlu0 %675, %v607
    %v677 = vpop.permute.xlu0 %676
    %678 = vset.pattern.permute.xlu0 0
    %679 = vperm.xlu0 %678, %v608
    %v680 = vpop.permute.xlu0 %679
    %vm681 = vcmp.eq.s32.totalorder %v611, 1
    %vm682 = vcmp.eq.s32.totalorder %v614, 1
    %vm683 = vcmp.eq.s32.totalorder %v617, 1
    %vm684 = vcmp.eq.s32.totalorder %v620, 1
    %vm685 = vcmp.eq.s32.totalorder %v623, 1
    %vm686 = vcmp.eq.s32.totalorder %v626, 1
    %vm687 = vcmp.eq.s32.totalorder %v629, 1
    %vm688 = vcmp.eq.s32.totalorder %v632, 1
    %vm689 = vcmp.eq.s32.totalorder %v635, 1
    %vm690 = vcmp.eq.s32.totalorder %v638, 1
    %vm691 = vcmp.eq.s32.totalorder %v641, 1
    %vm692 = vcmp.eq.s32.totalorder %v644, 1
    %vm693 = vcmp.eq.s32.totalorder %v647, 1
    %vm694 = vcmp.eq.s32.totalorder %v650, 1
    %vm695 = vcmp.eq.s32.totalorder %v653, 1
    %vm696 = vcmp.eq.s32.totalorder %v656, 1
    %vm697 = vcmp.eq.s32.totalorder %v659, 1
    %vm698 = vcmp.eq.s32.totalorder %v662, 1
    %vm699 = vcmp.eq.s32.totalorder %v665, 1
    %vm700 = vcmp.eq.s32.totalorder %v668, 1
    %vm701 = vcmp.eq.s32.totalorder %v671, 1
    %vm702 = vcmp.eq.s32.totalorder %v674, 1
    %vm703 = vcmp.eq.s32.totalorder %v677, 1
    %vm704 = vcmp.eq.s32.totalorder %v680, 1
    %v705 = vlaneseq
    %v706 = vshrl.u32 %v705, 7
    %v707 = vsub.s32 0, %v706
    %v708 = vrot.slane %v584, %v707
    %v709 = vsel %vm681, %v708, %v536
    %v710 = vsel %vm682, %v708, %v537
    %v711 = vsel %vm683, %v708, %v538
    %v712 = vsel %vm684, %v708, %v539
    %v713 = vsel %vm685, %v708, %v540
    %v714 = vsel %vm686, %v708, %v541
    %v715 = vsel %vm687, %v708, %v542
    %v716 = vsel %vm688, %v708, %v543
    %v717 = vsel %vm689, %v708, %v544
    %v718 = vsel %vm690, %v708, %v545
    %v719 = vsel %vm691, %v708, %v546
    %v720 = vsel %vm692, %v708, %v547
    %v721 = vsel %vm693, %v708, %v548
    %v722 = vsel %vm694, %v708, %v549
    %v723 = vsel %vm695, %v708, %v550
    %v724 = vsel %vm696, %v708, %v551
    %v725 = vsel %vm697, %v708, %v552
    %v726 = vsel %vm698, %v708, %v553
    %v727 = vsel %vm699, %v708, %v554
    %v728 = vsel %vm700, %v708, %v555
    %v729 = vsel %vm701, %v708, %v556
    %v730 = vsel %vm702, %v708, %v557
    %v731 = vsel %vm703, %v708, %v558
    %v732 = vsel %vm704, %v708, %v559
    %vm733 = vcmp.eq.s32.totalorder %v12, 5
    %vm734 = vcmp.eq.s32.totalorder %v13, 5
    %vm735 = vcmp.eq.s32.totalorder %v14, 5
    %vm736 = vcmp.eq.s32.totalorder %v15, 5
    %vm737 = vcmp.eq.s32.totalorder %v16, 5
    %vm738 = vcmp.eq.s32.totalorder %v17, 5
    %vm739 = vcmp.eq.s32.totalorder %v18, 5
    %vm740 = vcmp.eq.s32.totalorder %v19, 5
    %vm741 = vcmp.eq.s32.totalorder %v20, 5
    %vm742 = vcmp.eq.s32.totalorder %v21, 5
    %vm743 = vcmp.eq.s32.totalorder %v22, 5
    %vm744 = vcmp.eq.s32.totalorder %v23, 5
    %vm745 = vcmp.eq.s32.totalorder %v24, 5
    %vm746 = vcmp.eq.s32.totalorder %v25, 5
    %vm747 = vcmp.eq.s32.totalorder %v26, 5
    %vm748 = vcmp.eq.s32.totalorder %v27, 5
    %vm749 = vcmp.eq.s32.totalorder %v28, 5
    %vm750 = vcmp.eq.s32.totalorder %v29, 5
    %vm751 = vcmp.eq.s32.totalorder %v30, 5
    %vm752 = vcmp.eq.s32.totalorder %v31, 5
    %vm753 = vcmp.eq.s32.totalorder %v32, 5
    %vm754 = vcmp.eq.s32.totalorder %v33, 5
    %vm755 = vcmp.eq.s32.totalorder %v34, 5
    %vm756 = vcmp.eq.s32.totalorder %v35, 5
    %v757 = vld [vmem:[%s1 + $0x5] sm:$0x1]
    %v758 = vsel %vm733, 1, 0
    %v759 = vsel %vm734, 1, 0
    %v760 = vsel %vm735, 1, 0
    %v761 = vsel %vm736, 1, 0
    %v762 = vsel %vm737, 1, 0
    %v763 = vsel %vm738, 1, 0
    %v764 = vsel %vm739, 1, 0
    %v765 = vsel %vm740, 1, 0
    %v766 = vsel %vm741, 1, 0
    %v767 = vsel %vm742, 1, 0
    %v768 = vsel %vm743, 1, 0
    %v769 = vsel %vm744, 1, 0
    %v770 = vsel %vm745, 1, 0
    %v771 = vsel %vm746, 1, 0
    %v772 = vsel %vm747, 1, 0
    %v773 = vsel %vm748, 1, 0
    %v774 = vsel %vm749, 1, 0
    %v775 = vsel %vm750, 1, 0
    %v776 = vsel %vm751, 1, 0
    %v777 = vsel %vm752, 1, 0
    %v778 = vsel %vm753, 1, 0
    %v779 = vsel %vm754, 1, 0
    %v780 = vsel %vm755, 1, 0
    %v781 = vsel %vm756, 1, 0
    %782 = vset.pattern.permute.xlu0 0
    %783 = vperm.xlu0 %782, %v758
    %v784 = vpop.permute.xlu0 %783
    %785 = vset.pattern.permute.xlu0 0
    %786 = vperm.xlu0 %785, %v759
    %v787 = vpop.permute.xlu0 %786
    %788 = vset.pattern.permute.xlu0 0
    %789 = vperm.xlu0 %788, %v760
    %v790 = vpop.permute.xlu0 %789
    %791 = vset.pattern.permute.xlu0 0
    %792 = vperm.xlu0 %791, %v761
    %v793 = vpop.permute.xlu0 %792
    %794 = vset.pattern.permute.xlu0 0
    %795 = vperm.xlu0 %794, %v762
    %v796 = vpop.permute.xlu0 %795
    %797 = vset.pattern.permute.xlu0 0
    %798 = vperm.xlu0 %797, %v763
    %v799 = vpop.permute.xlu0 %798
    %800 = vset.pattern.permute.xlu0 0
    %801 = vperm.xlu0 %800, %v764
    %v802 = vpop.permute.xlu0 %801
    %803 = vset.pattern.permute.xlu0 0
    %804 = vperm.xlu0 %803, %v765
    %v805 = vpop.permute.xlu0 %804
    %806 = vset.pattern.permute.xlu0 0
    %807 = vperm.xlu0 %806, %v766
    %v808 = vpop.permute.xlu0 %807
    %809 = vset.pattern.permute.xlu0 0
    %810 = vperm.xlu0 %809, %v767
    %v811 = vpop.permute.xlu0 %810
    %812 = vset.pattern.permute.xlu0 0
    %813 = vperm.xlu0 %812, %v768
    %v814 = vpop.permute.xlu0 %813
    %815 = vset.pattern.permute.xlu0 0
    %816 = vperm.xlu0 %815, %v769
    %v817 = vpop.permute.xlu0 %816
    %818 = vset.pattern.permute.xlu0 0
    %819 = vperm.xlu0 %818, %v770
    %v820 = vpop.permute.xlu0 %819
    %821 = vset.pattern.permute.xlu0 0
    %822 = vperm.xlu0 %821, %v771
    %v823 = vpop.permute.xlu0 %822
    %824 = vset.pattern.permute.xlu0 0
    %825 = vperm.xlu0 %824, %v772
    %v826 = vpop.permute.xlu0 %825
    %827 = vset.pattern.permute.xlu0 0
    %828 = vperm.xlu0 %827, %v773
    %v829 = vpop.permute.xlu0 %828
    %830 = vset.pattern.permute.xlu0 0
    %831 = vperm.xlu0 %830, %v774
    %v832 = vpop.permute.xlu0 %831
    %833 = vset.pattern.permute.xlu0 0
    %834 = vperm.xlu0 %833, %v775
    %v835 = vpop.permute.xlu0 %834
    %836 = vset.pattern.permute.xlu0 0
    %837 = vperm.xlu0 %836, %v776
    %v838 = vpop.permute.xlu0 %837
    %839 = vset.pattern.permute.xlu0 0
    %840 = vperm.xlu0 %839, %v777
    %v841 = vpop.permute.xlu0 %840
    %842 = vset.pattern.permute.xlu0 0
    %843 = vperm.xlu0 %842, %v778
    %v844 = vpop.permute.xlu0 %843
    %845 = vset.pattern.permute.xlu0 0
    %846 = vperm.xlu0 %845, %v779
    %v847 = vpop.permute.xlu0 %846
    %848 = vset.pattern.permute.xlu0 0
    %849 = vperm.xlu0 %848, %v780
    %v850 = vpop.permute.xlu0 %849
    %851 = vset.pattern.permute.xlu0 0
    %852 = vperm.xlu0 %851, %v781
    %v853 = vpop.permute.xlu0 %852
    %vm854 = vcmp.eq.s32.totalorder %v784, 1
    %vm855 = vcmp.eq.s32.totalorder %v787, 1
    %vm856 = vcmp.eq.s32.totalorder %v790, 1
    %vm857 = vcmp.eq.s32.totalorder %v793, 1
    %vm858 = vcmp.eq.s32.totalorder %v796, 1
    %vm859 = vcmp.eq.s32.totalorder %v799, 1
    %vm860 = vcmp.eq.s32.totalorder %v802, 1
    %vm861 = vcmp.eq.s32.totalorder %v805, 1
    %vm862 = vcmp.eq.s32.totalorder %v808, 1
    %vm863 = vcmp.eq.s32.totalorder %v811, 1
    %vm864 = vcmp.eq.s32.totalorder %v814, 1
    %vm865 = vcmp.eq.s32.totalorder %v817, 1
    %vm866 = vcmp.eq.s32.totalorder %v820, 1
    %vm867 = vcmp.eq.s32.totalorder %v823, 1
    %vm868 = vcmp.eq.s32.totalorder %v826, 1
    %vm869 = vcmp.eq.s32.totalorder %v829, 1
    %vm870 = vcmp.eq.s32.totalorder %v832, 1
    %vm871 = vcmp.eq.s32.totalorder %v835, 1
    %vm872 = vcmp.eq.s32.totalorder %v838, 1
    %vm873 = vcmp.eq.s32.totalorder %v841, 1
    %vm874 = vcmp.eq.s32.totalorder %v844, 1
    %vm875 = vcmp.eq.s32.totalorder %v847, 1
    %vm876 = vcmp.eq.s32.totalorder %v850, 1
    %vm877 = vcmp.eq.s32.totalorder %v853, 1
    %v878 = vlaneseq
    %v879 = vshrl.u32 %v878, 7
    %v880 = vsub.s32 0, %v879
    %v881 = vrot.slane %v757, %v880
    %v882 = vsel %vm854, %v881, %v709
    %v883 = vsel %vm855, %v881, %v710
    %v884 = vsel %vm856, %v881, %v711
    %v885 = vsel %vm857, %v881, %v712
    %v886 = vsel %vm858, %v881, %v713
    %v887 = vsel %vm859, %v881, %v714
    %v888 = vsel %vm860, %v881, %v715
    %v889 = vsel %vm861, %v881, %v716
    %v890 = vsel %vm862, %v881, %v717
    %v891 = vsel %vm863, %v881, %v718
    %v892 = vsel %vm864, %v881, %v719
    %v893 = vsel %vm865, %v881, %v720
    %v894 = vsel %vm866, %v881, %v721
    %v895 = vsel %vm867, %v881, %v722
    %v896 = vsel %vm868, %v881, %v723
    %v897 = vsel %vm869, %v881, %v724
    %v898 = vsel %vm870, %v881, %v725
    %v899 = vsel %vm871, %v881, %v726
    %v900 = vsel %vm872, %v881, %v727
    %v901 = vsel %vm873, %v881, %v728
    %v902 = vsel %vm874, %v881, %v729
    %v903 = vsel %vm875, %v881, %v730
    %v904 = vsel %vm876, %v881, %v731
    %v905 = vsel %vm877, %v881, %v732
    %vm906 = vcmp.eq.s32.totalorder %v12, 6
    %vm907 = vcmp.eq.s32.totalorder %v13, 6
    %vm908 = vcmp.eq.s32.totalorder %v14, 6
    %vm909 = vcmp.eq.s32.totalorder %v15, 6
    %vm910 = vcmp.eq.s32.totalorder %v16, 6
    %vm911 = vcmp.eq.s32.totalorder %v17, 6
    %vm912 = vcmp.eq.s32.totalorder %v18, 6
    %vm913 = vcmp.eq.s32.totalorder %v19, 6
    %vm914 = vcmp.eq.s32.totalorder %v20, 6
    %vm915 = vcmp.eq.s32.totalorder %v21, 6
    %vm916 = vcmp.eq.s32.totalorder %v22, 6
    %vm917 = vcmp.eq.s32.totalorder %v23, 6
    %vm918 = vcmp.eq.s32.totalorder %v24, 6
    %vm919 = vcmp.eq.s32.totalorder %v25, 6
    %vm920 = vcmp.eq.s32.totalorder %v26, 6
    %vm921 = vcmp.eq.s32.totalorder %v27, 6
    %vm922 = vcmp.eq.s32.totalorder %v28, 6
    %vm923 = vcmp.eq.s32.totalorder %v29, 6
    %vm924 = vcmp.eq.s32.totalorder %v30, 6
    %vm925 = vcmp.eq.s32.totalorder %v31, 6
    %vm926 = vcmp.eq.s32.totalorder %v32, 6
    %vm927 = vcmp.eq.s32.totalorder %v33, 6
    %vm928 = vcmp.eq.s32.totalorder %v34, 6
    %vm929 = vcmp.eq.s32.totalorder %v35, 6
    %v930 = vld [vmem:[%s1 + $0x6] sm:$0x1]
    %v931 = vsel %vm906, 1, 0
    %v932 = vsel %vm907, 1, 0
    %v933 = vsel %vm908, 1, 0
    %v934 = vsel %vm909, 1, 0
    %v935 = vsel %vm910, 1, 0
    %v936 = vsel %vm911, 1, 0
    %v937 = vsel %vm912, 1, 0
    %v938 = vsel %vm913, 1, 0
    %v939 = vsel %vm914, 1, 0
    %v940 = vsel %vm915, 1, 0
    %v941 = vsel %vm916, 1, 0
    %v942 = vsel %vm917, 1, 0
    %v943 = vsel %vm918, 1, 0
    %v944 = vsel %vm919, 1, 0
    %v945 = vsel %vm920, 1, 0
    %v946 = vsel %vm921, 1, 0
    %v947 = vsel %vm922, 1, 0
    %v948 = vsel %vm923, 1, 0
    %v949 = vsel %vm924, 1, 0
    %v950 = vsel %vm925, 1, 0
    %v951 = vsel %vm926, 1, 0
    %v952 = vsel %vm927, 1, 0
    %v953 = vsel %vm928, 1, 0
    %v954 = vsel %vm929, 1, 0
    %955 = vset.pattern.permute.xlu0 0
    %956 = vperm.xlu0 %955, %v931
    %v957 = vpop.permute.xlu0 %956
    %958 = vset.pattern.permute.xlu0 0
    %959 = vperm.xlu0 %958, %v932
    %v960 = vpop.permute.xlu0 %959
    %961 = vset.pattern.permute.xlu0 0
    %962 = vperm.xlu0 %961, %v933
    %v963 = vpop.permute.xlu0 %962
    %964 = vset.pattern.permute.xlu0 0
    %965 = vperm.xlu0 %964, %v934
    %v966 = vpop.permute.xlu0 %965
    %967 = vset.pattern.permute.xlu0 0
    %968 = vperm.xlu0 %967, %v935
    %v969 = vpop.permute.xlu0 %968
    %970 = vset.pattern.permute.xlu0 0
    %971 = vperm.xlu0 %970, %v936
    %v972 = vpop.permute.xlu0 %971
    %973 = vset.pattern.permute.xlu0 0
    %974 = vperm.xlu0 %973, %v937
    %v975 = vpop.permute.xlu0 %974
    %976 = vset.pattern.permute.xlu0 0
    %977 = vperm.xlu0 %976, %v938
    %v978 = vpop.permute.xlu0 %977
    %979 = vset.pattern.permute.xlu0 0
    %980 = vperm.xlu0 %979, %v939
    %v981 = vpop.permute.xlu0 %980
    %982 = vset.pattern.permute.xlu0 0
    %983 = vperm.xlu0 %982, %v940
    %v984 = vpop.permute.xlu0 %983
    %985 = vset.pattern.permute.xlu0 0
    %986 = vperm.xlu0 %985, %v941
    %v987 = vpop.permute.xlu0 %986
    %988 = vset.pattern.permute.xlu0 0
    %989 = vperm.xlu0 %988, %v942
    %v990 = vpop.permute.xlu0 %989
    %991 = vset.pattern.permute.xlu0 0
    %992 = vperm.xlu0 %991, %v943
    %v993 = vpop.permute.xlu0 %992
    %994 = vset.pattern.permute.xlu0 0
    %995 = vperm.xlu0 %994, %v944
    %v996 = vpop.permute.xlu0 %995
    %997 = vset.pattern.permute.xlu0 0
    %998 = vperm.xlu0 %997, %v945
    %v999 = vpop.permute.xlu0 %998
    %1000 = vset.pattern.permute.xlu0 0
    %1001 = vperm.xlu0 %1000, %v946
    %v1002 = vpop.permute.xlu0 %1001
    %1003 = vset.pattern.permute.xlu0 0
    %1004 = vperm.xlu0 %1003, %v947
    %v1005 = vpop.permute.xlu0 %1004
    %1006 = vset.pattern.permute.xlu0 0
    %1007 = vperm.xlu0 %1006, %v948
    %v1008 = vpop.permute.xlu0 %1007
    %1009 = vset.pattern.permute.xlu0 0
    %1010 = vperm.xlu0 %1009, %v949
    %v1011 = vpop.permute.xlu0 %1010
    %1012 = vset.pattern.permute.xlu0 0
    %1013 = vperm.xlu0 %1012, %v950
    %v1014 = vpop.permute.xlu0 %1013
    %1015 = vset.pattern.permute.xlu0 0
    %1016 = vperm.xlu0 %1015, %v951
    %v1017 = vpop.permute.xlu0 %1016
    %1018 = vset.pattern.permute.xlu0 0
    %1019 = vperm.xlu0 %1018, %v952
    %v1020 = vpop.permute.xlu0 %1019
    %1021 = vset.pattern.permute.xlu0 0
    %1022 = vperm.xlu0 %1021, %v953
    %v1023 = vpop.permute.xlu0 %1022
    %1024 = vset.pattern.permute.xlu0 0
    %1025 = vperm.xlu0 %1024, %v954
    %v1026 = vpop.permute.xlu0 %1025
    %vm1027 = vcmp.eq.s32.totalorder %v957, 1
    %vm1028 = vcmp.eq.s32.totalorder %v960, 1
    %vm1029 = vcmp.eq.s32.totalorder %v963, 1
    %vm1030 = vcmp.eq.s32.totalorder %v966, 1
    %vm1031 = vcmp.eq.s32.totalorder %v969, 1
    %vm1032 = vcmp.eq.s32.totalorder %v972, 1
    %vm1033 = vcmp.eq.s32.totalorder %v975, 1
    %vm1034 = vcmp.eq.s32.totalorder %v978, 1
    %vm1035 = vcmp.eq.s32.totalorder %v981, 1
    %vm1036 = vcmp.eq.s32.totalorder %v984, 1
    %vm1037 = vcmp.eq.s32.totalorder %v987, 1
    %vm1038 = vcmp.eq.s32.totalorder %v990, 1
    %vm1039 = vcmp.eq.s32.totalorder %v993, 1
    %vm1040 = vcmp.eq.s32.totalorder %v996, 1
    %vm1041 = vcmp.eq.s32.totalorder %v999, 1
    %vm1042 = vcmp.eq.s32.totalorder %v1002, 1
    %vm1043 = vcmp.eq.s32.totalorder %v1005, 1
    %vm1044 = vcmp.eq.s32.totalorder %v1008, 1
    %vm1045 = vcmp.eq.s32.totalorder %v1011, 1
    %vm1046 = vcmp.eq.s32.totalorder %v1014, 1
    %vm1047 = vcmp.eq.s32.totalorder %v1017, 1
    %vm1048 = vcmp.eq.s32.totalorder %v1020, 1
    %vm1049 = vcmp.eq.s32.totalorder %v1023, 1
    %vm1050 = vcmp.eq.s32.totalorder %v1026, 1
    %v1051 = vlaneseq
    %v1052 = vshrl.u32 %v1051, 7
    %v1053 = vsub.s32 0, %v1052
    %v1054 = vrot.slane %v930, %v1053
    %v1055 = vsel %vm1027, %v1054, %v882
    %v1056 = vsel %vm1028, %v1054, %v883
    %v1057 = vsel %vm1029, %v1054, %v884
    %v1058 = vsel %vm1030, %v1054, %v885
    %v1059 = vsel %vm1031, %v1054, %v886
    %v1060 = vsel %vm1032, %v1054, %v887
    %v1061 = vsel %vm1033, %v1054, %v888
    %v1062 = vsel %vm1034, %v1054, %v889
    %v1063 = vsel %vm1035, %v1054, %v890
    %v1064 = vsel %vm1036, %v1054, %v891
    %v1065 = vsel %vm1037, %v1054, %v892
    %v1066 = vsel %vm1038, %v1054, %v893
    %v1067 = vsel %vm1039, %v1054, %v894
    %v1068 = vsel %vm1040, %v1054, %v895
    %v1069 = vsel %vm1041, %v1054, %v896
    %v1070 = vsel %vm1042, %v1054, %v897
    %v1071 = vsel %vm1043, %v1054, %v898
    %v1072 = vsel %vm1044, %v1054, %v899
    %v1073 = vsel %vm1045, %v1054, %v900
    %v1074 = vsel %vm1046, %v1054, %v901
    %v1075 = vsel %vm1047, %v1054, %v902
    %v1076 = vsel %vm1048, %v1054, %v903
    %v1077 = vsel %vm1049, %v1054, %v904
    %v1078 = vsel %vm1050, %v1054, %v905
    %vm1079 = vcmp.eq.s32.totalorder %v12, 7
    %vm1080 = vcmp.eq.s32.totalorder %v13, 7
    %vm1081 = vcmp.eq.s32.totalorder %v14, 7
    %vm1082 = vcmp.eq.s32.totalorder %v15, 7
    %vm1083 = vcmp.eq.s32.totalorder %v16, 7
    %vm1084 = vcmp.eq.s32.totalorder %v17, 7
    %vm1085 = vcmp.eq.s32.totalorder %v18, 7
    %vm1086 = vcmp.eq.s32.totalorder %v19, 7
    %vm1087 = vcmp.eq.s32.totalorder %v20, 7
    %vm1088 = vcmp.eq.s32.totalorder %v21, 7
    %vm1089 = vcmp.eq.s32.totalorder %v22, 7
    %vm1090 = vcmp.eq.s32.totalorder %v23, 7
    %vm1091 = vcmp.eq.s32.totalorder %v24, 7
    %vm1092 = vcmp.eq.s32.totalorder %v25, 7
    %vm1093 = vcmp.eq.s32.totalorder %v26, 7
    %vm1094 = vcmp.eq.s32.totalorder %v27, 7
    %vm1095 = vcmp.eq.s32.totalorder %v28, 7
    %vm1096 = vcmp.eq.s32.totalorder %v29, 7
    %vm1097 = vcmp.eq.s32.totalorder %v30, 7
    %vm1098 = vcmp.eq.s32.totalorder %v31, 7
    %vm1099 = vcmp.eq.s32.totalorder %v32, 7
    %vm1100 = vcmp.eq.s32.totalorder %v33, 7
    %vm1101 = vcmp.eq.s32.totalorder %v34, 7
    %vm1102 = vcmp.eq.s32.totalorder %v35, 7
    %v1103 = vld [vmem:[%s1 + $0x7] sm:$0x1]
    %v1104 = vsel %vm1079, 1, 0
    %v1105 = vsel %vm1080, 1, 0
    %v1106 = vsel %vm1081, 1, 0
    %v1107 = vsel %vm1082, 1, 0
    %v1108 = vsel %vm1083, 1, 0
    %v1109 = vsel %vm1084, 1, 0
    %v1110 = vsel %vm1085, 1, 0
    %v1111 = vsel %vm1086, 1, 0
    %v1112 = vsel %vm1087, 1, 0
    %v1113 = vsel %vm1088, 1, 0
    %v1114 = vsel %vm1089, 1, 0
    %v1115 = vsel %vm1090, 1, 0
    %v1116 = vsel %vm1091, 1, 0
    %v1117 = vsel %vm1092, 1, 0
    %v1118 = vsel %vm1093, 1, 0
    %v1119 = vsel %vm1094, 1, 0
    %v1120 = vsel %vm1095, 1, 0
    %v1121 = vsel %vm1096, 1, 0
    %v1122 = vsel %vm1097, 1, 0
    %v1123 = vsel %vm1098, 1, 0
    %v1124 = vsel %vm1099, 1, 0
    %v1125 = vsel %vm1100, 1, 0
    %v1126 = vsel %vm1101, 1, 0
    %v1127 = vsel %vm1102, 1, 0
    %1128 = vset.pattern.permute.xlu0 0
    %1129 = vperm.xlu0 %1128, %v1104
    %v1130 = vpop.permute.xlu0 %1129
    %1131 = vset.pattern.permute.xlu0 0
    %1132 = vperm.xlu0 %1131, %v1105
    %v1133 = vpop.permute.xlu0 %1132
    %1134 = vset.pattern.permute.xlu0 0
    %1135 = vperm.xlu0 %1134, %v1106
    %v1136 = vpop.permute.xlu0 %1135
    %1137 = vset.pattern.permute.xlu0 0
    %1138 = vperm.xlu0 %1137, %v1107
    %v1139 = vpop.permute.xlu0 %1138
    %1140 = vset.pattern.permute.xlu0 0
    %1141 = vperm.xlu0 %1140, %v1108
    %v1142 = vpop.permute.xlu0 %1141
    %1143 = vset.pattern.permute.xlu0 0
    %1144 = vperm.xlu0 %1143, %v1109
    %v1145 = vpop.permute.xlu0 %1144
    %1146 = vset.pattern.permute.xlu0 0
    %1147 = vperm.xlu0 %1146, %v1110
    %v1148 = vpop.permute.xlu0 %1147
    %1149 = vset.pattern.permute.xlu0 0
    %1150 = vperm.xlu0 %1149, %v1111
    %v1151 = vpop.permute.xlu0 %1150
    %1152 = vset.pattern.permute.xlu0 0
    %1153 = vperm.xlu0 %1152, %v1112
    %v1154 = vpop.permute.xlu0 %1153
    %1155 = vset.pattern.permute.xlu0 0
    %1156 = vperm.xlu0 %1155, %v1113
    %v1157 = vpop.permute.xlu0 %1156
    %1158 = vset.pattern.permute.xlu0 0
    %1159 = vperm.xlu0 %1158, %v1114
    %v1160 = vpop.permute.xlu0 %1159
    %1161 = vset.pattern.permute.xlu0 0
    %1162 = vperm.xlu0 %1161, %v1115
    %v1163 = vpop.permute.xlu0 %1162
    %1164 = vset.pattern.permute.xlu0 0
    %1165 = vperm.xlu0 %1164, %v1116
    %v1166 = vpop.permute.xlu0 %1165
    %1167 = vset.pattern.permute.xlu0 0
    %1168 = vperm.xlu0 %1167, %v1117
    %v1169 = vpop.permute.xlu0 %1168
    %1170 = vset.pattern.permute.xlu0 0
    %1171 = vperm.xlu0 %1170, %v1118
    %v1172 = vpop.permute.xlu0 %1171
    %1173 = vset.pattern.permute.xlu0 0
    %1174 = vperm.xlu0 %1173, %v1119
    %v1175 = vpop.permute.xlu0 %1174
    %1176 = vset.pattern.permute.xlu0 0
    %1177 = vperm.xlu0 %1176, %v1120
    %v1178 = vpop.permute.xlu0 %1177
    %1179 = vset.pattern.permute.xlu0 0
    %1180 = vperm.xlu0 %1179, %v1121
    %v1181 = vpop.permute.xlu0 %1180
    %1182 = vset.pattern.permute.xlu0 0
    %1183 = vperm.xlu0 %1182, %v1122
    %v1184 = vpop.permute.xlu0 %1183
    %1185 = vset.pattern.permute.xlu0 0
    %1186 = vperm.xlu0 %1185, %v1123
    %v1187 = vpop.permute.xlu0 %1186
    %1188 = vset.pattern.permute.xlu0 0
    %1189 = vperm.xlu0 %1188, %v1124
    %v1190 = vpop.permute.xlu0 %1189
    %1191 = vset.pattern.permute.xlu0 0
    %1192 = vperm.xlu0 %1191, %v1125
    %v1193 = vpop.permute.xlu0 %1192
    %1194 = vset.pattern.permute.xlu0 0
    %1195 = vperm.xlu0 %1194, %v1126
    %v1196 = vpop.permute.xlu0 %1195
    %1197 = vset.pattern.permute.xlu0 0
    %1198 = vperm.xlu0 %1197, %v1127
    %v1199 = vpop.permute.xlu0 %1198
    %vm1200 = vcmp.eq.s32.totalorder %v1130, 1
    %vm1201 = vcmp.eq.s32.totalorder %v1133, 1
    %vm1202 = vcmp.eq.s32.totalorder %v1136, 1
    %vm1203 = vcmp.eq.s32.totalorder %v1139, 1
    %vm1204 = vcmp.eq.s32.totalorder %v1142, 1
    %vm1205 = vcmp.eq.s32.totalorder %v1145, 1
    %vm1206 = vcmp.eq.s32.totalorder %v1148, 1
    %vm1207 = vcmp.eq.s32.totalorder %v1151, 1
    %vm1208 = vcmp.eq.s32.totalorder %v1154, 1
    %vm1209 = vcmp.eq.s32.totalorder %v1157, 1
    %vm1210 = vcmp.eq.s32.totalorder %v1160, 1
    %vm1211 = vcmp.eq.s32.totalorder %v1163, 1
    %vm1212 = vcmp.eq.s32.totalorder %v1166, 1
    %vm1213 = vcmp.eq.s32.totalorder %v1169, 1
    %vm1214 = vcmp.eq.s32.totalorder %v1172, 1
    %vm1215 = vcmp.eq.s32.totalorder %v1175, 1
    %vm1216 = vcmp.eq.s32.totalorder %v1178, 1
    %vm1217 = vcmp.eq.s32.totalorder %v1181, 1
    %vm1218 = vcmp.eq.s32.totalorder %v1184, 1
    %vm1219 = vcmp.eq.s32.totalorder %v1187, 1
    %vm1220 = vcmp.eq.s32.totalorder %v1190, 1
    %vm1221 = vcmp.eq.s32.totalorder %v1193, 1
    %vm1222 = vcmp.eq.s32.totalorder %v1196, 1
    %vm1223 = vcmp.eq.s32.totalorder %v1199, 1
    %v1224 = vlaneseq
    %v1225 = vshrl.u32 %v1224, 7
    %v1226 = vsub.s32 0, %v1225
    %v1227 = vrot.slane %v1103, %v1226
    %v1228 = vsel %vm1200, %v1227, %v1055
    %v1229 = vsel %vm1201, %v1227, %v1056
    %v1230 = vsel %vm1202, %v1227, %v1057
    %v1231 = vsel %vm1203, %v1227, %v1058
    %v1232 = vsel %vm1204, %v1227, %v1059
    %v1233 = vsel %vm1205, %v1227, %v1060
    %v1234 = vsel %vm1206, %v1227, %v1061
    %v1235 = vsel %vm1207, %v1227, %v1062
    %v1236 = vsel %vm1208, %v1227, %v1063
    %v1237 = vsel %vm1209, %v1227, %v1064
    %v1238 = vsel %vm1210, %v1227, %v1065
    %v1239 = vsel %vm1211, %v1227, %v1066
    %v1240 = vsel %vm1212, %v1227, %v1067
    %v1241 = vsel %vm1213, %v1227, %v1068
    %v1242 = vsel %vm1214, %v1227, %v1069
    %v1243 = vsel %vm1215, %v1227, %v1070
    %v1244 = vsel %vm1216, %v1227, %v1071
    %v1245 = vsel %vm1217, %v1227, %v1072
    %v1246 = vsel %vm1218, %v1227, %v1073
    %v1247 = vsel %vm1219, %v1227, %v1074
    %v1248 = vsel %vm1220, %v1227, %v1075
    %v1249 = vsel %vm1221, %v1227, %v1076
    %v1250 = vsel %vm1222, %v1227, %v1077
    %v1251 = vsel %vm1223, %v1227, %v1078
    %vm1252 = vcmp.eq.s32.totalorder %v12, 8
    %vm1253 = vcmp.eq.s32.totalorder %v13, 8
    %vm1254 = vcmp.eq.s32.totalorder %v14, 8
    %vm1255 = vcmp.eq.s32.totalorder %v15, 8
    %vm1256 = vcmp.eq.s32.totalorder %v16, 8
    %vm1257 = vcmp.eq.s32.totalorder %v17, 8
    %vm1258 = vcmp.eq.s32.totalorder %v18, 8
    %vm1259 = vcmp.eq.s32.totalorder %v19, 8
    %vm1260 = vcmp.eq.s32.totalorder %v20, 8
    %vm1261 = vcmp.eq.s32.totalorder %v21, 8
    %vm1262 = vcmp.eq.s32.totalorder %v22, 8
    %vm1263 = vcmp.eq.s32.totalorder %v23, 8
    %vm1264 = vcmp.eq.s32.totalorder %v24, 8
    %vm1265 = vcmp.eq.s32.totalorder %v25, 8
    %vm1266 = vcmp.eq.s32.totalorder %v26, 8
    %vm1267 = vcmp.eq.s32.totalorder %v27, 8
    %vm1268 = vcmp.eq.s32.totalorder %v28, 8
    %vm1269 = vcmp.eq.s32.totalorder %v29, 8
    %vm1270 = vcmp.eq.s32.totalorder %v30, 8
    %vm1271 = vcmp.eq.s32.totalorder %v31, 8
    %vm1272 = vcmp.eq.s32.totalorder %v32, 8
    %vm1273 = vcmp.eq.s32.totalorder %v33, 8
    %vm1274 = vcmp.eq.s32.totalorder %v34, 8
    %vm1275 = vcmp.eq.s32.totalorder %v35, 8
    %v1276 = vld [vmem:[%s1 + $0x8] sm:$0x1]
    %v1277 = vsel %vm1252, 1, 0
    %v1278 = vsel %vm1253, 1, 0
    %v1279 = vsel %vm1254, 1, 0
    %v1280 = vsel %vm1255, 1, 0
    %v1281 = vsel %vm1256, 1, 0
    %v1282 = vsel %vm1257, 1, 0
    %v1283 = vsel %vm1258, 1, 0
    %v1284 = vsel %vm1259, 1, 0
    %v1285 = vsel %vm1260, 1, 0
    %v1286 = vsel %vm1261, 1, 0
    %v1287 = vsel %vm1262, 1, 0
    %v1288 = vsel %vm1263, 1, 0
    %v1289 = vsel %vm1264, 1, 0
    %v1290 = vsel %vm1265, 1, 0
    %v1291 = vsel %vm1266, 1, 0
    %v1292 = vsel %vm1267, 1, 0
    %v1293 = vsel %vm1268, 1, 0
    %v1294 = vsel %vm1269, 1, 0
    %v1295 = vsel %vm1270, 1, 0
    %v1296 = vsel %vm1271, 1, 0
    %v1297 = vsel %vm1272, 1, 0
    %v1298 = vsel %vm1273, 1, 0
    %v1299 = vsel %vm1274, 1, 0
    %v1300 = vsel %vm1275, 1, 0
    %1301 = vset.pattern.permute.xlu0 0
    %1302 = vperm.xlu0 %1301, %v1277
    %v1303 = vpop.permute.xlu0 %1302
    %1304 = vset.pattern.permute.xlu0 0
    %1305 = vperm.xlu0 %1304, %v1278
    %v1306 = vpop.permute.xlu0 %1305
    %1307 = vset.pattern.permute.xlu0 0
    %1308 = vperm.xlu0 %1307, %v1279
    %v1309 = vpop.permute.xlu0 %1308
    %1310 = vset.pattern.permute.xlu0 0
    %1311 = vperm.xlu0 %1310, %v1280
    %v1312 = vpop.permute.xlu0 %1311
    %1313 = vset.pattern.permute.xlu0 0
    %1314 = vperm.xlu0 %1313, %v1281
    %v1315 = vpop.permute.xlu0 %1314
    %1316 = vset.pattern.permute.xlu0 0
    %1317 = vperm.xlu0 %1316, %v1282
    %v1318 = vpop.permute.xlu0 %1317
    %1319 = vset.pattern.permute.xlu0 0
    %1320 = vperm.xlu0 %1319, %v1283
    %v1321 = vpop.permute.xlu0 %1320
    %1322 = vset.pattern.permute.xlu0 0
    %1323 = vperm.xlu0 %1322, %v1284
    %v1324 = vpop.permute.xlu0 %1323
    %1325 = vset.pattern.permute.xlu0 0
    %1326 = vperm.xlu0 %1325, %v1285
    %v1327 = vpop.permute.xlu0 %1326
    %1328 = vset.pattern.permute.xlu0 0
    %1329 = vperm.xlu0 %1328, %v1286
    %v1330 = vpop.permute.xlu0 %1329
    %1331 = vset.pattern.permute.xlu0 0
    %1332 = vperm.xlu0 %1331, %v1287
    %v1333 = vpop.permute.xlu0 %1332
    %1334 = vset.pattern.permute.xlu0 0
    %1335 = vperm.xlu0 %1334, %v1288
    %v1336 = vpop.permute.xlu0 %1335
    %1337 = vset.pattern.permute.xlu0 0
    %1338 = vperm.xlu0 %1337, %v1289
    %v1339 = vpop.permute.xlu0 %1338
    %1340 = vset.pattern.permute.xlu0 0
    %1341 = vperm.xlu0 %1340, %v1290
    %v1342 = vpop.permute.xlu0 %1341
    %1343 = vset.pattern.permute.xlu0 0
    %1344 = vperm.xlu0 %1343, %v1291
    %v1345 = vpop.permute.xlu0 %1344
    %1346 = vset.pattern.permute.xlu0 0
    %1347 = vperm.xlu0 %1346, %v1292
    %v1348 = vpop.permute.xlu0 %1347
    %1349 = vset.pattern.permute.xlu0 0
    %1350 = vperm.xlu0 %1349, %v1293
    %v1351 = vpop.permute.xlu0 %1350
    %1352 = vset.pattern.permute.xlu0 0
    %1353 = vperm.xlu0 %1352, %v1294
    %v1354 = vpop.permute.xlu0 %1353
    %1355 = vset.pattern.permute.xlu0 0
    %1356 = vperm.xlu0 %1355, %v1295
    %v1357 = vpop.permute.xlu0 %1356
    %1358 = vset.pattern.permute.xlu0 0
    %1359 = vperm.xlu0 %1358, %v1296
    %v1360 = vpop.permute.xlu0 %1359
    %1361 = vset.pattern.permute.xlu0 0
    %1362 = vperm.xlu0 %1361, %v1297
    %v1363 = vpop.permute.xlu0 %1362
    %1364 = vset.pattern.permute.xlu0 0
    %1365 = vperm.xlu0 %1364, %v1298
    %v1366 = vpop.permute.xlu0 %1365
    %1367 = vset.pattern.permute.xlu0 0
    %1368 = vperm.xlu0 %1367, %v1299
    %v1369 = vpop.permute.xlu0 %1368
    %1370 = vset.pattern.permute.xlu0 0
    %1371 = vperm.xlu0 %1370, %v1300
    %v1372 = vpop.permute.xlu0 %1371
    %vm1373 = vcmp.eq.s32.totalorder %v1303, 1
    %vm1374 = vcmp.eq.s32.totalorder %v1306, 1
    %vm1375 = vcmp.eq.s32.totalorder %v1309, 1
    %vm1376 = vcmp.eq.s32.totalorder %v1312, 1
    %vm1377 = vcmp.eq.s32.totalorder %v1315, 1
    %vm1378 = vcmp.eq.s32.totalorder %v1318, 1
    %vm1379 = vcmp.eq.s32.totalorder %v1321, 1
    %vm1380 = vcmp.eq.s32.totalorder %v1324, 1
    %vm1381 = vcmp.eq.s32.totalorder %v1327, 1
    %vm1382 = vcmp.eq.s32.totalorder %v1330, 1
    %vm1383 = vcmp.eq.s32.totalorder %v1333, 1
    %vm1384 = vcmp.eq.s32.totalorder %v1336, 1
    %vm1385 = vcmp.eq.s32.totalorder %v1339, 1
    %vm1386 = vcmp.eq.s32.totalorder %v1342, 1
    %vm1387 = vcmp.eq.s32.totalorder %v1345, 1
    %vm1388 = vcmp.eq.s32.totalorder %v1348, 1
    %vm1389 = vcmp.eq.s32.totalorder %v1351, 1
    %vm1390 = vcmp.eq.s32.totalorder %v1354, 1
    %vm1391 = vcmp.eq.s32.totalorder %v1357, 1
    %vm1392 = vcmp.eq.s32.totalorder %v1360, 1
    %vm1393 = vcmp.eq.s32.totalorder %v1363, 1
    %vm1394 = vcmp.eq.s32.totalorder %v1366, 1
    %vm1395 = vcmp.eq.s32.totalorder %v1369, 1
    %vm1396 = vcmp.eq.s32.totalorder %v1372, 1
    %v1397 = vlaneseq
    %v1398 = vshrl.u32 %v1397, 7
    %v1399 = vsub.s32 0, %v1398
    %v1400 = vrot.slane %v1276, %v1399
    %v1401 = vsel %vm1373, %v1400, %v1228
    %v1402 = vsel %vm1374, %v1400, %v1229
    %v1403 = vsel %vm1375, %v1400, %v1230
    %v1404 = vsel %vm1376, %v1400, %v1231
    %v1405 = vsel %vm1377, %v1400, %v1232
    %v1406 = vsel %vm1378, %v1400, %v1233
    %v1407 = vsel %vm1379, %v1400, %v1234
    %v1408 = vsel %vm1380, %v1400, %v1235
    %v1409 = vsel %vm1381, %v1400, %v1236
    %v1410 = vsel %vm1382, %v1400, %v1237
    %v1411 = vsel %vm1383, %v1400, %v1238
    %v1412 = vsel %vm1384, %v1400, %v1239
    %v1413 = vsel %vm1385, %v1400, %v1240
    %v1414 = vsel %vm1386, %v1400, %v1241
    %v1415 = vsel %vm1387, %v1400, %v1242
    %v1416 = vsel %vm1388, %v1400, %v1243
    %v1417 = vsel %vm1389, %v1400, %v1244
    %v1418 = vsel %vm1390, %v1400, %v1245
    %v1419 = vsel %vm1391, %v1400, %v1246
    %v1420 = vsel %vm1392, %v1400, %v1247
    %v1421 = vsel %vm1393, %v1400, %v1248
    %v1422 = vsel %vm1394, %v1400, %v1249
    %v1423 = vsel %vm1395, %v1400, %v1250
    %v1424 = vsel %vm1396, %v1400, %v1251
    %vm1425 = vcmp.eq.s32.totalorder %v12, 9
    %vm1426 = vcmp.eq.s32.totalorder %v13, 9
    %vm1427 = vcmp.eq.s32.totalorder %v14, 9
    %vm1428 = vcmp.eq.s32.totalorder %v15, 9
    %vm1429 = vcmp.eq.s32.totalorder %v16, 9
    %vm1430 = vcmp.eq.s32.totalorder %v17, 9
    %vm1431 = vcmp.eq.s32.totalorder %v18, 9
    %vm1432 = vcmp.eq.s32.totalorder %v19, 9
    %vm1433 = vcmp.eq.s32.totalorder %v20, 9
    %vm1434 = vcmp.eq.s32.totalorder %v21, 9
    %vm1435 = vcmp.eq.s32.totalorder %v22, 9
    %vm1436 = vcmp.eq.s32.totalorder %v23, 9
    %vm1437 = vcmp.eq.s32.totalorder %v24, 9
    %vm1438 = vcmp.eq.s32.totalorder %v25, 9
    %vm1439 = vcmp.eq.s32.totalorder %v26, 9
    %vm1440 = vcmp.eq.s32.totalorder %v27, 9
    %vm1441 = vcmp.eq.s32.totalorder %v28, 9
    %vm1442 = vcmp.eq.s32.totalorder %v29, 9
    %vm1443 = vcmp.eq.s32.totalorder %v30, 9
    %vm1444 = vcmp.eq.s32.totalorder %v31, 9
    %vm1445 = vcmp.eq.s32.totalorder %v32, 9
    %vm1446 = vcmp.eq.s32.totalorder %v33, 9
    %vm1447 = vcmp.eq.s32.totalorder %v34, 9
    %vm1448 = vcmp.eq.s32.totalorder %v35, 9
    %v1449 = vld [vmem:[%s1 + $0x9] sm:$0x1]
    %v1450 = vsel %vm1425, 1, 0
    %v1451 = vsel %vm1426, 1, 0
    %v1452 = vsel %vm1427, 1, 0
    %v1453 = vsel %vm1428, 1, 0
    %v1454 = vsel %vm1429, 1, 0
    %v1455 = vsel %vm1430, 1, 0
    %v1456 = vsel %vm1431, 1, 0
    %v1457 = vsel %vm1432, 1, 0
    %v1458 = vsel %vm1433, 1, 0
    %v1459 = vsel %vm1434, 1, 0
    %v1460 = vsel %vm1435, 1, 0
    %v1461 = vsel %vm1436, 1, 0
    %v1462 = vsel %vm1437, 1, 0
    %v1463 = vsel %vm1438, 1, 0
    %v1464 = vsel %vm1439, 1, 0
    %v1465 = vsel %vm1440, 1, 0
    %v1466 = vsel %vm1441, 1, 0
    %v1467 = vsel %vm1442, 1, 0
    %v1468 = vsel %vm1443, 1, 0
    %v1469 = vsel %vm1444, 1, 0
    %v1470 = vsel %vm1445, 1, 0
    %v1471 = vsel %vm1446, 1, 0
    %v1472 = vsel %vm1447, 1, 0
    %v1473 = vsel %vm1448, 1, 0
    %1474 = vset.pattern.permute.xlu0 0
    %1475 = vperm.xlu0 %1474, %v1450
    %v1476 = vpop.permute.xlu0 %1475
    %1477 = vset.pattern.permute.xlu0 0
    %1478 = vperm.xlu0 %1477, %v1451
    %v1479 = vpop.permute.xlu0 %1478
    %1480 = vset.pattern.permute.xlu0 0
    %1481 = vperm.xlu0 %1480, %v1452
    %v1482 = vpop.permute.xlu0 %1481
    %1483 = vset.pattern.permute.xlu0 0
    %1484 = vperm.xlu0 %1483, %v1453
    %v1485 = vpop.permute.xlu0 %1484
    %1486 = vset.pattern.permute.xlu0 0
    %1487 = vperm.xlu0 %1486, %v1454
    %v1488 = vpop.permute.xlu0 %1487
    %1489 = vset.pattern.permute.xlu0 0
    %1490 = vperm.xlu0 %1489, %v1455
    %v1491 = vpop.permute.xlu0 %1490
    %1492 = vset.pattern.permute.xlu0 0
    %1493 = vperm.xlu0 %1492, %v1456
    %v1494 = vpop.permute.xlu0 %1493
    %1495 = vset.pattern.permute.xlu0 0
    %1496 = vperm.xlu0 %1495, %v1457
    %v1497 = vpop.permute.xlu0 %1496
    %1498 = vset.pattern.permute.xlu0 0
    %1499 = vperm.xlu0 %1498, %v1458
    %v1500 = vpop.permute.xlu0 %1499
    %1501 = vset.pattern.permute.xlu0 0
    %1502 = vperm.xlu0 %1501, %v1459
    %v1503 = vpop.permute.xlu0 %1502
    %1504 = vset.pattern.permute.xlu0 0
    %1505 = vperm.xlu0 %1504, %v1460
    %v1506 = vpop.permute.xlu0 %1505
    %1507 = vset.pattern.permute.xlu0 0
    %1508 = vperm.xlu0 %1507, %v1461
    %v1509 = vpop.permute.xlu0 %1508
    %1510 = vset.pattern.permute.xlu0 0
    %1511 = vperm.xlu0 %1510, %v1462
    %v1512 = vpop.permute.xlu0 %1511
    %1513 = vset.pattern.permute.xlu0 0
    %1514 = vperm.xlu0 %1513, %v1463
    %v1515 = vpop.permute.xlu0 %1514
    %1516 = vset.pattern.permute.xlu0 0
    %1517 = vperm.xlu0 %1516, %v1464
    %v1518 = vpop.permute.xlu0 %1517
    %1519 = vset.pattern.permute.xlu0 0
    %1520 = vperm.xlu0 %1519, %v1465
    %v1521 = vpop.permute.xlu0 %1520
    %1522 = vset.pattern.permute.xlu0 0
    %1523 = vperm.xlu0 %1522, %v1466
    %v1524 = vpop.permute.xlu0 %1523
    %1525 = vset.pattern.permute.xlu0 0
    %1526 = vperm.xlu0 %1525, %v1467
    %v1527 = vpop.permute.xlu0 %1526
    %1528 = vset.pattern.permute.xlu0 0
    %1529 = vperm.xlu0 %1528, %v1468
    %v1530 = vpop.permute.xlu0 %1529
    %1531 = vset.pattern.permute.xlu0 0
    %1532 = vperm.xlu0 %1531, %v1469
    %v1533 = vpop.permute.xlu0 %1532
    %1534 = vset.pattern.permute.xlu0 0
    %1535 = vperm.xlu0 %1534, %v1470
    %v1536 = vpop.permute.xlu0 %1535
    %1537 = vset.pattern.permute.xlu0 0
    %1538 = vperm.xlu0 %1537, %v1471
    %v1539 = vpop.permute.xlu0 %1538
    %1540 = vset.pattern.permute.xlu0 0
    %1541 = vperm.xlu0 %1540, %v1472
    %v1542 = vpop.permute.xlu0 %1541
    %1543 = vset.pattern.permute.xlu0 0
    %1544 = vperm.xlu0 %1543, %v1473
    %v1545 = vpop.permute.xlu0 %1544
    %vm1546 = vcmp.eq.s32.totalorder %v1476, 1
    %vm1547 = vcmp.eq.s32.totalorder %v1479, 1
    %vm1548 = vcmp.eq.s32.totalorder %v1482, 1
    %vm1549 = vcmp.eq.s32.totalorder %v1485, 1
    %vm1550 = vcmp.eq.s32.totalorder %v1488, 1
    %vm1551 = vcmp.eq.s32.totalorder %v1491, 1
    %vm1552 = vcmp.eq.s32.totalorder %v1494, 1
    %vm1553 = vcmp.eq.s32.totalorder %v1497, 1
    %vm1554 = vcmp.eq.s32.totalorder %v1500, 1
    %vm1555 = vcmp.eq.s32.totalorder %v1503, 1
    %vm1556 = vcmp.eq.s32.totalorder %v1506, 1
    %vm1557 = vcmp.eq.s32.totalorder %v1509, 1
    %vm1558 = vcmp.eq.s32.totalorder %v1512, 1
    %vm1559 = vcmp.eq.s32.totalorder %v1515, 1
    %vm1560 = vcmp.eq.s32.totalorder %v1518, 1
    %vm1561 = vcmp.eq.s32.totalorder %v1521, 1
    %vm1562 = vcmp.eq.s32.totalorder %v1524, 1
    %vm1563 = vcmp.eq.s32.totalorder %v1527, 1
    %vm1564 = vcmp.eq.s32.totalorder %v1530, 1
    %vm1565 = vcmp.eq.s32.totalorder %v1533, 1
    %vm1566 = vcmp.eq.s32.totalorder %v1536, 1
    %vm1567 = vcmp.eq.s32.totalorder %v1539, 1
    %vm1568 = vcmp.eq.s32.totalorder %v1542, 1
    %vm1569 = vcmp.eq.s32.totalorder %v1545, 1
    %v1570 = vlaneseq
    %v1571 = vshrl.u32 %v1570, 7
    %v1572 = vsub.s32 0, %v1571
    %v1573 = vrot.slane %v1449, %v1572
    %v1574 = vsel %vm1546, %v1573, %v1401
    %v1575 = vsel %vm1547, %v1573, %v1402
    %v1576 = vsel %vm1548, %v1573, %v1403
    %v1577 = vsel %vm1549, %v1573, %v1404
    %v1578 = vsel %vm1550, %v1573, %v1405
    %v1579 = vsel %vm1551, %v1573, %v1406
    %v1580 = vsel %vm1552, %v1573, %v1407
    %v1581 = vsel %vm1553, %v1573, %v1408
    %v1582 = vsel %vm1554, %v1573, %v1409
    %v1583 = vsel %vm1555, %v1573, %v1410
    %v1584 = vsel %vm1556, %v1573, %v1411
    %v1585 = vsel %vm1557, %v1573, %v1412
    %v1586 = vsel %vm1558, %v1573, %v1413
    %v1587 = vsel %vm1559, %v1573, %v1414
    %v1588 = vsel %vm1560, %v1573, %v1415
    %v1589 = vsel %vm1561, %v1573, %v1416
    %v1590 = vsel %vm1562, %v1573, %v1417
    %v1591 = vsel %vm1563, %v1573, %v1418
    %v1592 = vsel %vm1564, %v1573, %v1419
    %v1593 = vsel %vm1565, %v1573, %v1420
    %v1594 = vsel %vm1566, %v1573, %v1421
    %v1595 = vsel %vm1567, %v1573, %v1422
    %v1596 = vsel %vm1568, %v1573, %v1423
    %v1597 = vsel %vm1569, %v1573, %v1424
    %vm1598 = vcmp.eq.s32.totalorder %v12, 10
    %vm1599 = vcmp.eq.s32.totalorder %v13, 10
    %vm1600 = vcmp.eq.s32.totalorder %v14, 10
    %vm1601 = vcmp.eq.s32.totalorder %v15, 10
    %vm1602 = vcmp.eq.s32.totalorder %v16, 10
    %vm1603 = vcmp.eq.s32.totalorder %v17, 10
    %vm1604 = vcmp.eq.s32.totalorder %v18, 10
    %vm1605 = vcmp.eq.s32.totalorder %v19, 10
    %vm1606 = vcmp.eq.s32.totalorder %v20, 10
    %vm1607 = vcmp.eq.s32.totalorder %v21, 10
    %vm1608 = vcmp.eq.s32.totalorder %v22, 10
    %vm1609 = vcmp.eq.s32.totalorder %v23, 10
    %vm1610 = vcmp.eq.s32.totalorder %v24, 10
    %vm1611 = vcmp.eq.s32.totalorder %v25, 10
    %vm1612 = vcmp.eq.s32.totalorder %v26, 10
    %vm1613 = vcmp.eq.s32.totalorder %v27, 10
    %vm1614 = vcmp.eq.s32.totalorder %v28, 10
    %vm1615 = vcmp.eq.s32.totalorder %v29, 10
    %vm1616 = vcmp.eq.s32.totalorder %v30, 10
    %vm1617 = vcmp.eq.s32.totalorder %v31, 10
    %vm1618 = vcmp.eq.s32.totalorder %v32, 10
    %vm1619 = vcmp.eq.s32.totalorder %v33, 10
    %vm1620 = vcmp.eq.s32.totalorder %v34, 10
    %vm1621 = vcmp.eq.s32.totalorder %v35, 10
    %v1622 = vld [vmem:[%s1 + $0xa] sm:$0x1]
    %v1623 = vsel %vm1598, 1, 0
    %v1624 = vsel %vm1599, 1, 0
    %v1625 = vsel %vm1600, 1, 0
    %v1626 = vsel %vm1601, 1, 0
    %v1627 = vsel %vm1602, 1, 0
    %v1628 = vsel %vm1603, 1, 0
    %v1629 = vsel %vm1604, 1, 0
    %v1630 = vsel %vm1605, 1, 0
    %v1631 = vsel %vm1606, 1, 0
    %v1632 = vsel %vm1607, 1, 0
    %v1633 = vsel %vm1608, 1, 0
    %v1634 = vsel %vm1609, 1, 0
    %v1635 = vsel %vm1610, 1, 0
    %v1636 = vsel %vm1611, 1, 0
    %v1637 = vsel %vm1612, 1, 0
    %v1638 = vsel %vm1613, 1, 0
    %v1639 = vsel %vm1614, 1, 0
    %v1640 = vsel %vm1615, 1, 0
    %v1641 = vsel %vm1616, 1, 0
    %v1642 = vsel %vm1617, 1, 0
    %v1643 = vsel %vm1618, 1, 0
    %v1644 = vsel %vm1619, 1, 0
    %v1645 = vsel %vm1620, 1, 0
    %v1646 = vsel %vm1621, 1, 0
    %1647 = vset.pattern.permute.xlu0 0
    %1648 = vperm.xlu0 %1647, %v1623
    %v1649 = vpop.permute.xlu0 %1648
    %1650 = vset.pattern.permute.xlu0 0
    %1651 = vperm.xlu0 %1650, %v1624
    %v1652 = vpop.permute.xlu0 %1651
    %1653 = vset.pattern.permute.xlu0 0
    %1654 = vperm.xlu0 %1653, %v1625
    %v1655 = vpop.permute.xlu0 %1654
    %1656 = vset.pattern.permute.xlu0 0
    %1657 = vperm.xlu0 %1656, %v1626
    %v1658 = vpop.permute.xlu0 %1657
    %1659 = vset.pattern.permute.xlu0 0
    %1660 = vperm.xlu0 %1659, %v1627
    %v1661 = vpop.permute.xlu0 %1660
    %1662 = vset.pattern.permute.xlu0 0
    %1663 = vperm.xlu0 %1662, %v1628
    %v1664 = vpop.permute.xlu0 %1663
    %1665 = vset.pattern.permute.xlu0 0
    %1666 = vperm.xlu0 %1665, %v1629
    %v1667 = vpop.permute.xlu0 %1666
    %1668 = vset.pattern.permute.xlu0 0
    %1669 = vperm.xlu0 %1668, %v1630
    %v1670 = vpop.permute.xlu0 %1669
    %1671 = vset.pattern.permute.xlu0 0
    %1672 = vperm.xlu0 %1671, %v1631
    %v1673 = vpop.permute.xlu0 %1672
    %1674 = vset.pattern.permute.xlu0 0
    %1675 = vperm.xlu0 %1674, %v1632
    %v1676 = vpop.permute.xlu0 %1675
    %1677 = vset.pattern.permute.xlu0 0
    %1678 = vperm.xlu0 %1677, %v1633
    %v1679 = vpop.permute.xlu0 %1678
    %1680 = vset.pattern.permute.xlu0 0
    %1681 = vperm.xlu0 %1680, %v1634
    %v1682 = vpop.permute.xlu0 %1681
    %1683 = vset.pattern.permute.xlu0 0
    %1684 = vperm.xlu0 %1683, %v1635
    %v1685 = vpop.permute.xlu0 %1684
    %1686 = vset.pattern.permute.xlu0 0
    %1687 = vperm.xlu0 %1686, %v1636
    %v1688 = vpop.permute.xlu0 %1687
    %1689 = vset.pattern.permute.xlu0 0
    %1690 = vperm.xlu0 %1689, %v1637
    %v1691 = vpop.permute.xlu0 %1690
    %1692 = vset.pattern.permute.xlu0 0
    %1693 = vperm.xlu0 %1692, %v1638
    %v1694 = vpop.permute.xlu0 %1693
    %1695 = vset.pattern.permute.xlu0 0
    %1696 = vperm.xlu0 %1695, %v1639
    %v1697 = vpop.permute.xlu0 %1696
    %1698 = vset.pattern.permute.xlu0 0
    %1699 = vperm.xlu0 %1698, %v1640
    %v1700 = vpop.permute.xlu0 %1699
    %1701 = vset.pattern.permute.xlu0 0
    %1702 = vperm.xlu0 %1701, %v1641
    %v1703 = vpop.permute.xlu0 %1702
    %1704 = vset.pattern.permute.xlu0 0
    %1705 = vperm.xlu0 %1704, %v1642
    %v1706 = vpop.permute.xlu0 %1705
    %1707 = vset.pattern.permute.xlu0 0
    %1708 = vperm.xlu0 %1707, %v1643
    %v1709 = vpop.permute.xlu0 %1708
    %1710 = vset.pattern.permute.xlu0 0
    %1711 = vperm.xlu0 %1710, %v1644
    %v1712 = vpop.permute.xlu0 %1711
    %1713 = vset.pattern.permute.xlu0 0
    %1714 = vperm.xlu0 %1713, %v1645
    %v1715 = vpop.permute.xlu0 %1714
    %1716 = vset.pattern.permute.xlu0 0
    %1717 = vperm.xlu0 %1716, %v1646
    %v1718 = vpop.permute.xlu0 %1717
    %vm1719 = vcmp.eq.s32.totalorder %v1649, 1
    %vm1720 = vcmp.eq.s32.totalorder %v1652, 1
    %vm1721 = vcmp.eq.s32.totalorder %v1655, 1
    %vm1722 = vcmp.eq.s32.totalorder %v1658, 1
    %vm1723 = vcmp.eq.s32.totalorder %v1661, 1
    %vm1724 = vcmp.eq.s32.totalorder %v1664, 1
    %vm1725 = vcmp.eq.s32.totalorder %v1667, 1
    %vm1726 = vcmp.eq.s32.totalorder %v1670, 1
    %vm1727 = vcmp.eq.s32.totalorder %v1673, 1
    %vm1728 = vcmp.eq.s32.totalorder %v1676, 1
    %vm1729 = vcmp.eq.s32.totalorder %v1679, 1
    %vm1730 = vcmp.eq.s32.totalorder %v1682, 1
    %vm1731 = vcmp.eq.s32.totalorder %v1685, 1
    %vm1732 = vcmp.eq.s32.totalorder %v1688, 1
    %vm1733 = vcmp.eq.s32.totalorder %v1691, 1
    %vm1734 = vcmp.eq.s32.totalorder %v1694, 1
    %vm1735 = vcmp.eq.s32.totalorder %v1697, 1
    %vm1736 = vcmp.eq.s32.totalorder %v1700, 1
    %vm1737 = vcmp.eq.s32.totalorder %v1703, 1
    %vm1738 = vcmp.eq.s32.totalorder %v1706, 1
    %vm1739 = vcmp.eq.s32.totalorder %v1709, 1
    %vm1740 = vcmp.eq.s32.totalorder %v1712, 1
    %vm1741 = vcmp.eq.s32.totalorder %v1715, 1
    %vm1742 = vcmp.eq.s32.totalorder %v1718, 1
    %v1743 = vlaneseq
    %v1744 = vshrl.u32 %v1743, 7
    %v1745 = vsub.s32 0, %v1744
    %v1746 = vrot.slane %v1622, %v1745
    %v1747 = vsel %vm1719, %v1746, %v1574
    %v1748 = vsel %vm1720, %v1746, %v1575
    %v1749 = vsel %vm1721, %v1746, %v1576
    %v1750 = vsel %vm1722, %v1746, %v1577
    %v1751 = vsel %vm1723, %v1746, %v1578
    %v1752 = vsel %vm1724, %v1746, %v1579
    %v1753 = vsel %vm1725, %v1746, %v1580
    %v1754 = vsel %vm1726, %v1746, %v1581
    %v1755 = vsel %vm1727, %v1746, %v1582
    %v1756 = vsel %vm1728, %v1746, %v1583
    %v1757 = vsel %vm1729, %v1746, %v1584
    %v1758 = vsel %vm1730, %v1746, %v1585
    %v1759 = vsel %vm1731, %v1746, %v1586
    %v1760 = vsel %vm1732, %v1746, %v1587
    %v1761 = vsel %vm1733, %v1746, %v1588
    %v1762 = vsel %vm1734, %v1746, %v1589
    %v1763 = vsel %vm1735, %v1746, %v1590
    %v1764 = vsel %vm1736, %v1746, %v1591
    %v1765 = vsel %vm1737, %v1746, %v1592
    %v1766 = vsel %vm1738, %v1746, %v1593
    %v1767 = vsel %vm1739, %v1746, %v1594
    %v1768 = vsel %vm1740, %v1746, %v1595
    %v1769 = vsel %vm1741, %v1746, %v1596
    %v1770 = vsel %vm1742, %v1746, %v1597
    %vm1771 = vcmp.eq.s32.totalorder %v12, 11
    %vm1772 = vcmp.eq.s32.totalorder %v13, 11
    %vm1773 = vcmp.eq.s32.totalorder %v14, 11
    %vm1774 = vcmp.eq.s32.totalorder %v15, 11
    %vm1775 = vcmp.eq.s32.totalorder %v16, 11
    %vm1776 = vcmp.eq.s32.totalorder %v17, 11
    %vm1777 = vcmp.eq.s32.totalorder %v18, 11
    %vm1778 = vcmp.eq.s32.totalorder %v19, 11
    %vm1779 = vcmp.eq.s32.totalorder %v20, 11
    %vm1780 = vcmp.eq.s32.totalorder %v21, 11
    %vm1781 = vcmp.eq.s32.totalorder %v22, 11
    %vm1782 = vcmp.eq.s32.totalorder %v23, 11
    %vm1783 = vcmp.eq.s32.totalorder %v24, 11
    %vm1784 = vcmp.eq.s32.totalorder %v25, 11
    %vm1785 = vcmp.eq.s32.totalorder %v26, 11
    %vm1786 = vcmp.eq.s32.totalorder %v27, 11
    %vm1787 = vcmp.eq.s32.totalorder %v28, 11
    %vm1788 = vcmp.eq.s32.totalorder %v29, 11
    %vm1789 = vcmp.eq.s32.totalorder %v30, 11
    %vm1790 = vcmp.eq.s32.totalorder %v31, 11
    %vm1791 = vcmp.eq.s32.totalorder %v32, 11
    %vm1792 = vcmp.eq.s32.totalorder %v33, 11
    %vm1793 = vcmp.eq.s32.totalorder %v34, 11
    %vm1794 = vcmp.eq.s32.totalorder %v35, 11
    %v1795 = vld [vmem:[%s1 + $0xb] sm:$0x1]
    %v1796 = vsel %vm1771, 1, 0
    %v1797 = vsel %vm1772, 1, 0
    %v1798 = vsel %vm1773, 1, 0
    %v1799 = vsel %vm1774, 1, 0
    %v1800 = vsel %vm1775, 1, 0
    %v1801 = vsel %vm1776, 1, 0
    %v1802 = vsel %vm1777, 1, 0
    %v1803 = vsel %vm1778, 1, 0
    %v1804 = vsel %vm1779, 1, 0
    %v1805 = vsel %vm1780, 1, 0
    %v1806 = vsel %vm1781, 1, 0
    %v1807 = vsel %vm1782, 1, 0
    %v1808 = vsel %vm1783, 1, 0
    %v1809 = vsel %vm1784, 1, 0
    %v1810 = vsel %vm1785, 1, 0
    %v1811 = vsel %vm1786, 1, 0
    %v1812 = vsel %vm1787, 1, 0
    %v1813 = vsel %vm1788, 1, 0
    %v1814 = vsel %vm1789, 1, 0
    %v1815 = vsel %vm1790, 1, 0
    %v1816 = vsel %vm1791, 1, 0
    %v1817 = vsel %vm1792, 1, 0
    %v1818 = vsel %vm1793, 1, 0
    %v1819 = vsel %vm1794, 1, 0
    %1820 = vset.pattern.permute.xlu0 0
    %1821 = vperm.xlu0 %1820, %v1796
    %v1822 = vpop.permute.xlu0 %1821
    %1823 = vset.pattern.permute.xlu0 0
    %1824 = vperm.xlu0 %1823, %v1797
    %v1825 = vpop.permute.xlu0 %1824
    %1826 = vset.pattern.permute.xlu0 0
    %1827 = vperm.xlu0 %1826, %v1798
    %v1828 = vpop.permute.xlu0 %1827
    %1829 = vset.pattern.permute.xlu0 0
    %1830 = vperm.xlu0 %1829, %v1799
    %v1831 = vpop.permute.xlu0 %1830
    %1832 = vset.pattern.permute.xlu0 0
    %1833 = vperm.xlu0 %1832, %v1800
    %v1834 = vpop.permute.xlu0 %1833
    %1835 = vset.pattern.permute.xlu0 0
    %1836 = vperm.xlu0 %1835, %v1801
    %v1837 = vpop.permute.xlu0 %1836
    %1838 = vset.pattern.permute.xlu0 0
    %1839 = vperm.xlu0 %1838, %v1802
    %v1840 = vpop.permute.xlu0 %1839
    %1841 = vset.pattern.permute.xlu0 0
    %1842 = vperm.xlu0 %1841, %v1803
    %v1843 = vpop.permute.xlu0 %1842
    %1844 = vset.pattern.permute.xlu0 0
    %1845 = vperm.xlu0 %1844, %v1804
    %v1846 = vpop.permute.xlu0 %1845
    %1847 = vset.pattern.permute.xlu0 0
    %1848 = vperm.xlu0 %1847, %v1805
    %v1849 = vpop.permute.xlu0 %1848
    %1850 = vset.pattern.permute.xlu0 0
    %1851 = vperm.xlu0 %1850, %v1806
    %v1852 = vpop.permute.xlu0 %1851
    %1853 = vset.pattern.permute.xlu0 0
    %1854 = vperm.xlu0 %1853, %v1807
    %v1855 = vpop.permute.xlu0 %1854
    %1856 = vset.pattern.permute.xlu0 0
    %1857 = vperm.xlu0 %1856, %v1808
    %v1858 = vpop.permute.xlu0 %1857
    %1859 = vset.pattern.permute.xlu0 0
    %1860 = vperm.xlu0 %1859, %v1809
    %v1861 = vpop.permute.xlu0 %1860
    %1862 = vset.pattern.permute.xlu0 0
    %1863 = vperm.xlu0 %1862, %v1810
    %v1864 = vpop.permute.xlu0 %1863
    %1865 = vset.pattern.permute.xlu0 0
    %1866 = vperm.xlu0 %1865, %v1811
    %v1867 = vpop.permute.xlu0 %1866
    %1868 = vset.pattern.permute.xlu0 0
    %1869 = vperm.xlu0 %1868, %v1812
    %v1870 = vpop.permute.xlu0 %1869
    %1871 = vset.pattern.permute.xlu0 0
    %1872 = vperm.xlu0 %1871, %v1813
    %v1873 = vpop.permute.xlu0 %1872
    %1874 = vset.pattern.permute.xlu0 0
    %1875 = vperm.xlu0 %1874, %v1814
    %v1876 = vpop.permute.xlu0 %1875
    %1877 = vset.pattern.permute.xlu0 0
    %1878 = vperm.xlu0 %1877, %v1815
    %v1879 = vpop.permute.xlu0 %1878
    %1880 = vset.pattern.permute.xlu0 0
    %1881 = vperm.xlu0 %1880, %v1816
    %v1882 = vpop.permute.xlu0 %1881
    %1883 = vset.pattern.permute.xlu0 0
    %1884 = vperm.xlu0 %1883, %v1817
    %v1885 = vpop.permute.xlu0 %1884
    %1886 = vset.pattern.permute.xlu0 0
    %1887 = vperm.xlu0 %1886, %v1818
    %v1888 = vpop.permute.xlu0 %1887
    %1889 = vset.pattern.permute.xlu0 0
    %1890 = vperm.xlu0 %1889, %v1819
    %v1891 = vpop.permute.xlu0 %1890
    %vm1892 = vcmp.eq.s32.totalorder %v1822, 1
    %vm1893 = vcmp.eq.s32.totalorder %v1825, 1
    %vm1894 = vcmp.eq.s32.totalorder %v1828, 1
    %vm1895 = vcmp.eq.s32.totalorder %v1831, 1
    %vm1896 = vcmp.eq.s32.totalorder %v1834, 1
    %vm1897 = vcmp.eq.s32.totalorder %v1837, 1
    %vm1898 = vcmp.eq.s32.totalorder %v1840, 1
    %vm1899 = vcmp.eq.s32.totalorder %v1843, 1
    %vm1900 = vcmp.eq.s32.totalorder %v1846, 1
    %vm1901 = vcmp.eq.s32.totalorder %v1849, 1
    %vm1902 = vcmp.eq.s32.totalorder %v1852, 1
    %vm1903 = vcmp.eq.s32.totalorder %v1855, 1
    %vm1904 = vcmp.eq.s32.totalorder %v1858, 1
    %vm1905 = vcmp.eq.s32.totalorder %v1861, 1
    %vm1906 = vcmp.eq.s32.totalorder %v1864, 1
    %vm1907 = vcmp.eq.s32.totalorder %v1867, 1
    %vm1908 = vcmp.eq.s32.totalorder %v1870, 1
    %vm1909 = vcmp.eq.s32.totalorder %v1873, 1
    %vm1910 = vcmp.eq.s32.totalorder %v1876, 1
    %vm1911 = vcmp.eq.s32.totalorder %v1879, 1
    %vm1912 = vcmp.eq.s32.totalorder %v1882, 1
    %vm1913 = vcmp.eq.s32.totalorder %v1885, 1
    %vm1914 = vcmp.eq.s32.totalorder %v1888, 1
    %vm1915 = vcmp.eq.s32.totalorder %v1891, 1
    %v1916 = vlaneseq
    %v1917 = vshrl.u32 %v1916, 7
    %v1918 = vsub.s32 0, %v1917
    %v1919 = vrot.slane %v1795, %v1918
    %v1920 = vsel %vm1892, %v1919, %v1747
    %v1921 = vsel %vm1893, %v1919, %v1748
    %v1922 = vsel %vm1894, %v1919, %v1749
    %v1923 = vsel %vm1895, %v1919, %v1750
    %v1924 = vsel %vm1896, %v1919, %v1751
    %v1925 = vsel %vm1897, %v1919, %v1752
    %v1926 = vsel %vm1898, %v1919, %v1753
    %v1927 = vsel %vm1899, %v1919, %v1754
    %v1928 = vsel %vm1900, %v1919, %v1755
    %v1929 = vsel %vm1901, %v1919, %v1756
    %v1930 = vsel %vm1902, %v1919, %v1757
    %v1931 = vsel %vm1903, %v1919, %v1758
    %v1932 = vsel %vm1904, %v1919, %v1759
    %v1933 = vsel %vm1905, %v1919, %v1760
    %v1934 = vsel %vm1906, %v1919, %v1761
    %v1935 = vsel %vm1907, %v1919, %v1762
    %v1936 = vsel %vm1908, %v1919, %v1763
    %v1937 = vsel %vm1909, %v1919, %v1764
    %v1938 = vsel %vm1910, %v1919, %v1765
    %v1939 = vsel %vm1911, %v1919, %v1766
    %v1940 = vsel %vm1912, %v1919, %v1767
    %v1941 = vsel %vm1913, %v1919, %v1768
    %v1942 = vsel %vm1914, %v1919, %v1769
    %v1943 = vsel %vm1915, %v1919, %v1770
    %vm1944 = vcmp.eq.s32.totalorder %v12, 12
    %vm1945 = vcmp.eq.s32.totalorder %v13, 12
    %vm1946 = vcmp.eq.s32.totalorder %v14, 12
    %vm1947 = vcmp.eq.s32.totalorder %v15, 12
    %vm1948 = vcmp.eq.s32.totalorder %v16, 12
    %vm1949 = vcmp.eq.s32.totalorder %v17, 12
    %vm1950 = vcmp.eq.s32.totalorder %v18, 12
    %vm1951 = vcmp.eq.s32.totalorder %v19, 12
    %vm1952 = vcmp.eq.s32.totalorder %v20, 12
    %vm1953 = vcmp.eq.s32.totalorder %v21, 12
    %vm1954 = vcmp.eq.s32.totalorder %v22, 12
    %vm1955 = vcmp.eq.s32.totalorder %v23, 12
    %vm1956 = vcmp.eq.s32.totalorder %v24, 12
    %vm1957 = vcmp.eq.s32.totalorder %v25, 12
    %vm1958 = vcmp.eq.s32.totalorder %v26, 12
    %vm1959 = vcmp.eq.s32.totalorder %v27, 12
    %vm1960 = vcmp.eq.s32.totalorder %v28, 12
    %vm1961 = vcmp.eq.s32.totalorder %v29, 12
    %vm1962 = vcmp.eq.s32.totalorder %v30, 12
    %vm1963 = vcmp.eq.s32.totalorder %v31, 12
    %vm1964 = vcmp.eq.s32.totalorder %v32, 12
    %vm1965 = vcmp.eq.s32.totalorder %v33, 12
    %vm1966 = vcmp.eq.s32.totalorder %v34, 12
    %vm1967 = vcmp.eq.s32.totalorder %v35, 12
    %v1968 = vld [vmem:[%s1 + $0xc] sm:$0x1]
    %v1969 = vsel %vm1944, 1, 0
    %v1970 = vsel %vm1945, 1, 0
    %v1971 = vsel %vm1946, 1, 0
    %v1972 = vsel %vm1947, 1, 0
    %v1973 = vsel %vm1948, 1, 0
    %v1974 = vsel %vm1949, 1, 0
    %v1975 = vsel %vm1950, 1, 0
    %v1976 = vsel %vm1951, 1, 0
    %v1977 = vsel %vm1952, 1, 0
    %v1978 = vsel %vm1953, 1, 0
    %v1979 = vsel %vm1954, 1, 0
    %v1980 = vsel %vm1955, 1, 0
    %v1981 = vsel %vm1956, 1, 0
    %v1982 = vsel %vm1957, 1, 0
    %v1983 = vsel %vm1958, 1, 0
    %v1984 = vsel %vm1959, 1, 0
    %v1985 = vsel %vm1960, 1, 0
    %v1986 = vsel %vm1961, 1, 0
    %v1987 = vsel %vm1962, 1, 0
    %v1988 = vsel %vm1963, 1, 0
    %v1989 = vsel %vm1964, 1, 0
    %v1990 = vsel %vm1965, 1, 0
    %v1991 = vsel %vm1966, 1, 0
    %v1992 = vsel %vm1967, 1, 0
    %1993 = vset.pattern.permute.xlu0 0
    %1994 = vperm.xlu0 %1993, %v1969
    %v1995 = vpop.permute.xlu0 %1994
    %1996 = vset.pattern.permute.xlu0 0
    %1997 = vperm.xlu0 %1996, %v1970
    %v1998 = vpop.permute.xlu0 %1997
    %1999 = vset.pattern.permute.xlu0 0
    %2000 = vperm.xlu0 %1999, %v1971
    %v2001 = vpop.permute.xlu0 %2000
    %2002 = vset.pattern.permute.xlu0 0
    %2003 = vperm.xlu0 %2002, %v1972
    %v2004 = vpop.permute.xlu0 %2003
    %2005 = vset.pattern.permute.xlu0 0
    %2006 = vperm.xlu0 %2005, %v1973
    %v2007 = vpop.permute.xlu0 %2006
    %2008 = vset.pattern.permute.xlu0 0
    %2009 = vperm.xlu0 %2008, %v1974
    %v2010 = vpop.permute.xlu0 %2009
    %2011 = vset.pattern.permute.xlu0 0
    %2012 = vperm.xlu0 %2011, %v1975
    %v2013 = vpop.permute.xlu0 %2012
    %2014 = vset.pattern.permute.xlu0 0
    %2015 = vperm.xlu0 %2014, %v1976
    %v2016 = vpop.permute.xlu0 %2015
    %2017 = vset.pattern.permute.xlu0 0
    %2018 = vperm.xlu0 %2017, %v1977
    %v2019 = vpop.permute.xlu0 %2018
    %2020 = vset.pattern.permute.xlu0 0
    %2021 = vperm.xlu0 %2020, %v1978
    %v2022 = vpop.permute.xlu0 %2021
    %2023 = vset.pattern.permute.xlu0 0
    %2024 = vperm.xlu0 %2023, %v1979
    %v2025 = vpop.permute.xlu0 %2024
    %2026 = vset.pattern.permute.xlu0 0
    %2027 = vperm.xlu0 %2026, %v1980
    %v2028 = vpop.permute.xlu0 %2027
    %2029 = vset.pattern.permute.xlu0 0
    %2030 = vperm.xlu0 %2029, %v1981
    %v2031 = vpop.permute.xlu0 %2030
    %2032 = vset.pattern.permute.xlu0 0
    %2033 = vperm.xlu0 %2032, %v1982
    %v2034 = vpop.permute.xlu0 %2033
    %2035 = vset.pattern.permute.xlu0 0
    %2036 = vperm.xlu0 %2035, %v1983
    %v2037 = vpop.permute.xlu0 %2036
    %2038 = vset.pattern.permute.xlu0 0
    %2039 = vperm.xlu0 %2038, %v1984
    %v2040 = vpop.permute.xlu0 %2039
    %2041 = vset.pattern.permute.xlu0 0
    %2042 = vperm.xlu0 %2041, %v1985
    %v2043 = vpop.permute.xlu0 %2042
    %2044 = vset.pattern.permute.xlu0 0
    %2045 = vperm.xlu0 %2044, %v1986
    %v2046 = vpop.permute.xlu0 %2045
    %2047 = vset.pattern.permute.xlu0 0
    %2048 = vperm.xlu0 %2047, %v1987
    %v2049 = vpop.permute.xlu0 %2048
    %2050 = vset.pattern.permute.xlu0 0
    %2051 = vperm.xlu0 %2050, %v1988
    %v2052 = vpop.permute.xlu0 %2051
    %2053 = vset.pattern.permute.xlu0 0
    %2054 = vperm.xlu0 %2053, %v1989
    %v2055 = vpop.permute.xlu0 %2054
    %2056 = vset.pattern.permute.xlu0 0
    %2057 = vperm.xlu0 %2056, %v1990
    %v2058 = vpop.permute.xlu0 %2057
    %2059 = vset.pattern.permute.xlu0 0
    %2060 = vperm.xlu0 %2059, %v1991
    %v2061 = vpop.permute.xlu0 %2060
    %2062 = vset.pattern.permute.xlu0 0
    %2063 = vperm.xlu0 %2062, %v1992
    %v2064 = vpop.permute.xlu0 %2063
    %vm2065 = vcmp.eq.s32.totalorder %v1995, 1
    %vm2066 = vcmp.eq.s32.totalorder %v1998, 1
    %vm2067 = vcmp.eq.s32.totalorder %v2001, 1
    %vm2068 = vcmp.eq.s32.totalorder %v2004, 1
    %vm2069 = vcmp.eq.s32.totalorder %v2007, 1
    %vm2070 = vcmp.eq.s32.totalorder %v2010, 1
    %vm2071 = vcmp.eq.s32.totalorder %v2013, 1
    %vm2072 = vcmp.eq.s32.totalorder %v2016, 1
    %vm2073 = vcmp.eq.s32.totalorder %v2019, 1
    %vm2074 = vcmp.eq.s32.totalorder %v2022, 1
    %vm2075 = vcmp.eq.s32.totalorder %v2025, 1
    %vm2076 = vcmp.eq.s32.totalorder %v2028, 1
    %vm2077 = vcmp.eq.s32.totalorder %v2031, 1
    %vm2078 = vcmp.eq.s32.totalorder %v2034, 1
    %vm2079 = vcmp.eq.s32.totalorder %v2037, 1
    %vm2080 = vcmp.eq.s32.totalorder %v2040, 1
    %vm2081 = vcmp.eq.s32.totalorder %v2043, 1
    %vm2082 = vcmp.eq.s32.totalorder %v2046, 1
    %vm2083 = vcmp.eq.s32.totalorder %v2049, 1
    %vm2084 = vcmp.eq.s32.totalorder %v2052, 1
    %vm2085 = vcmp.eq.s32.totalorder %v2055, 1
    %vm2086 = vcmp.eq.s32.totalorder %v2058, 1
    %vm2087 = vcmp.eq.s32.totalorder %v2061, 1
    %vm2088 = vcmp.eq.s32.totalorder %v2064, 1
    %v2089 = vlaneseq
    %v2090 = vshrl.u32 %v2089, 7
    %v2091 = vsub.s32 0, %v2090
    %v2092 = vrot.slane %v1968, %v2091
    %v2093 = vsel %vm2065, %v2092, %v1920
    %v2094 = vsel %vm2066, %v2092, %v1921
    %v2095 = vsel %vm2067, %v2092, %v1922
    %v2096 = vsel %vm2068, %v2092, %v1923
    %v2097 = vsel %vm2069, %v2092, %v1924
    %v2098 = vsel %vm2070, %v2092, %v1925
    %v2099 = vsel %vm2071, %v2092, %v1926
    %v2100 = vsel %vm2072, %v2092, %v1927
    %v2101 = vsel %vm2073, %v2092, %v1928
    %v2102 = vsel %vm2074, %v2092, %v1929
    %v2103 = vsel %vm2075, %v2092, %v1930
    %v2104 = vsel %vm2076, %v2092, %v1931
    %v2105 = vsel %vm2077, %v2092, %v1932
    %v2106 = vsel %vm2078, %v2092, %v1933
    %v2107 = vsel %vm2079, %v2092, %v1934
    %v2108 = vsel %vm2080, %v2092, %v1935
    %v2109 = vsel %vm2081, %v2092, %v1936
    %v2110 = vsel %vm2082, %v2092, %v1937
    %v2111 = vsel %vm2083, %v2092, %v1938
    %v2112 = vsel %vm2084, %v2092, %v1939
    %v2113 = vsel %vm2085, %v2092, %v1940
    %v2114 = vsel %vm2086, %v2092, %v1941
    %v2115 = vsel %vm2087, %v2092, %v1942
    %v2116 = vsel %vm2088, %v2092, %v1943
    %vm2117 = vcmp.eq.s32.totalorder %v12, 13
    %vm2118 = vcmp.eq.s32.totalorder %v13, 13
    %vm2119 = vcmp.eq.s32.totalorder %v14, 13
    %vm2120 = vcmp.eq.s32.totalorder %v15, 13
    %vm2121 = vcmp.eq.s32.totalorder %v16, 13
    %vm2122 = vcmp.eq.s32.totalorder %v17, 13
    %vm2123 = vcmp.eq.s32.totalorder %v18, 13
    %vm2124 = vcmp.eq.s32.totalorder %v19, 13
    %vm2125 = vcmp.eq.s32.totalorder %v20, 13
    %vm2126 = vcmp.eq.s32.totalorder %v21, 13
    %vm2127 = vcmp.eq.s32.totalorder %v22, 13
    %vm2128 = vcmp.eq.s32.totalorder %v23, 13
    %vm2129 = vcmp.eq.s32.totalorder %v24, 13
    %vm2130 = vcmp.eq.s32.totalorder %v25, 13
    %vm2131 = vcmp.eq.s32.totalorder %v26, 13
    %vm2132 = vcmp.eq.s32.totalorder %v27, 13
    %vm2133 = vcmp.eq.s32.totalorder %v28, 13
    %vm2134 = vcmp.eq.s32.totalorder %v29, 13
    %vm2135 = vcmp.eq.s32.totalorder %v30, 13
    %vm2136 = vcmp.eq.s32.totalorder %v31, 13
    %vm2137 = vcmp.eq.s32.totalorder %v32, 13
    %vm2138 = vcmp.eq.s32.totalorder %v33, 13
    %vm2139 = vcmp.eq.s32.totalorder %v34, 13
    %vm2140 = vcmp.eq.s32.totalorder %v35, 13
    %v2141 = vld [vmem:[%s1 + $0xd] sm:$0x1]
    %v2142 = vsel %vm2117, 1, 0
    %v2143 = vsel %vm2118, 1, 0
    %v2144 = vsel %vm2119, 1, 0
    %v2145 = vsel %vm2120, 1, 0
    %v2146 = vsel %vm2121, 1, 0
    %v2147 = vsel %vm2122, 1, 0
    %v2148 = vsel %vm2123, 1, 0
    %v2149 = vsel %vm2124, 1, 0
    %v2150 = vsel %vm2125, 1, 0
    %v2151 = vsel %vm2126, 1, 0
    %v2152 = vsel %vm2127, 1, 0
    %v2153 = vsel %vm2128, 1, 0
    %v2154 = vsel %vm2129, 1, 0
    %v2155 = vsel %vm2130, 1, 0
    %v2156 = vsel %vm2131, 1, 0
    %v2157 = vsel %vm2132, 1, 0
    %v2158 = vsel %vm2133, 1, 0
    %v2159 = vsel %vm2134, 1, 0
    %v2160 = vsel %vm2135, 1, 0
    %v2161 = vsel %vm2136, 1, 0
    %v2162 = vsel %vm2137, 1, 0
    %v2163 = vsel %vm2138, 1, 0
    %v2164 = vsel %vm2139, 1, 0
    %v2165 = vsel %vm2140, 1, 0
    %2166 = vset.pattern.permute.xlu0 0
    %2167 = vperm.xlu0 %2166, %v2142
    %v2168 = vpop.permute.xlu0 %2167
    %2169 = vset.pattern.permute.xlu0 0
    %2170 = vperm.xlu0 %2169, %v2143
    %v2171 = vpop.permute.xlu0 %2170
    %2172 = vset.pattern.permute.xlu0 0
    %2173 = vperm.xlu0 %2172, %v2144
    %v2174 = vpop.permute.xlu0 %2173
    %2175 = vset.pattern.permute.xlu0 0
    %2176 = vperm.xlu0 %2175, %v2145
    %v2177 = vpop.permute.xlu0 %2176
    %2178 = vset.pattern.permute.xlu0 0
    %2179 = vperm.xlu0 %2178, %v2146
    %v2180 = vpop.permute.xlu0 %2179
    %2181 = vset.pattern.permute.xlu0 0
    %2182 = vperm.xlu0 %2181, %v2147
    %v2183 = vpop.permute.xlu0 %2182
    %2184 = vset.pattern.permute.xlu0 0
    %2185 = vperm.xlu0 %2184, %v2148
    %v2186 = vpop.permute.xlu0 %2185
    %2187 = vset.pattern.permute.xlu0 0
    %2188 = vperm.xlu0 %2187, %v2149
    %v2189 = vpop.permute.xlu0 %2188
    %2190 = vset.pattern.permute.xlu0 0
    %2191 = vperm.xlu0 %2190, %v2150
    %v2192 = vpop.permute.xlu0 %2191
    %2193 = vset.pattern.permute.xlu0 0
    %2194 = vperm.xlu0 %2193, %v2151
    %v2195 = vpop.permute.xlu0 %2194
    %2196 = vset.pattern.permute.xlu0 0
    %2197 = vperm.xlu0 %2196, %v2152
    %v2198 = vpop.permute.xlu0 %2197
    %2199 = vset.pattern.permute.xlu0 0
    %2200 = vperm.xlu0 %2199, %v2153
    %v2201 = vpop.permute.xlu0 %2200
    %2202 = vset.pattern.permute.xlu0 0
    %2203 = vperm.xlu0 %2202, %v2154
    %v2204 = vpop.permute.xlu0 %2203
    %2205 = vset.pattern.permute.xlu0 0
    %2206 = vperm.xlu0 %2205, %v2155
    %v2207 = vpop.permute.xlu0 %2206
    %2208 = vset.pattern.permute.xlu0 0
    %2209 = vperm.xlu0 %2208, %v2156
    %v2210 = vpop.permute.xlu0 %2209
    %2211 = vset.pattern.permute.xlu0 0
    %2212 = vperm.xlu0 %2211, %v2157
    %v2213 = vpop.permute.xlu0 %2212
    %2214 = vset.pattern.permute.xlu0 0
    %2215 = vperm.xlu0 %2214, %v2158
    %v2216 = vpop.permute.xlu0 %2215
    %2217 = vset.pattern.permute.xlu0 0
    %2218 = vperm.xlu0 %2217, %v2159
    %v2219 = vpop.permute.xlu0 %2218
    %2220 = vset.pattern.permute.xlu0 0
    %2221 = vperm.xlu0 %2220, %v2160
    %v2222 = vpop.permute.xlu0 %2221
    %2223 = vset.pattern.permute.xlu0 0
    %2224 = vperm.xlu0 %2223, %v2161
    %v2225 = vpop.permute.xlu0 %2224
    %2226 = vset.pattern.permute.xlu0 0
    %2227 = vperm.xlu0 %2226, %v2162
    %v2228 = vpop.permute.xlu0 %2227
    %2229 = vset.pattern.permute.xlu0 0
    %2230 = vperm.xlu0 %2229, %v2163
    %v2231 = vpop.permute.xlu0 %2230
    %2232 = vset.pattern.permute.xlu0 0
    %2233 = vperm.xlu0 %2232, %v2164
    %v2234 = vpop.permute.xlu0 %2233
    %2235 = vset.pattern.permute.xlu0 0
    %2236 = vperm.xlu0 %2235, %v2165
    %v2237 = vpop.permute.xlu0 %2236
    %vm2238 = vcmp.eq.s32.totalorder %v2168, 1
    %vm2239 = vcmp.eq.s32.totalorder %v2171, 1
    %vm2240 = vcmp.eq.s32.totalorder %v2174, 1
    %vm2241 = vcmp.eq.s32.totalorder %v2177, 1
    %vm2242 = vcmp.eq.s32.totalorder %v2180, 1
    %vm2243 = vcmp.eq.s32.totalorder %v2183, 1
    %vm2244 = vcmp.eq.s32.totalorder %v2186, 1
    %vm2245 = vcmp.eq.s32.totalorder %v2189, 1
    %vm2246 = vcmp.eq.s32.totalorder %v2192, 1
    %vm2247 = vcmp.eq.s32.totalorder %v2195, 1
    %vm2248 = vcmp.eq.s32.totalorder %v2198, 1
    %vm2249 = vcmp.eq.s32.totalorder %v2201, 1
    %vm2250 = vcmp.eq.s32.totalorder %v2204, 1
    %vm2251 = vcmp.eq.s32.totalorder %v2207, 1
    %vm2252 = vcmp.eq.s32.totalorder %v2210, 1
    %vm2253 = vcmp.eq.s32.totalorder %v2213, 1
    %vm2254 = vcmp.eq.s32.totalorder %v2216, 1
    %vm2255 = vcmp.eq.s32.totalorder %v2219, 1
    %vm2256 = vcmp.eq.s32.totalorder %v2222, 1
    %vm2257 = vcmp.eq.s32.totalorder %v2225, 1
    %vm2258 = vcmp.eq.s32.totalorder %v2228, 1
    %vm2259 = vcmp.eq.s32.totalorder %v2231, 1
    %vm2260 = vcmp.eq.s32.totalorder %v2234, 1
    %vm2261 = vcmp.eq.s32.totalorder %v2237, 1
    %v2262 = vlaneseq
    %v2263 = vshrl.u32 %v2262, 7
    %v2264 = vsub.s32 0, %v2263
    %v2265 = vrot.slane %v2141, %v2264
    %v2266 = vsel %vm2238, %v2265, %v2093
    %v2267 = vsel %vm2239, %v2265, %v2094
    %v2268 = vsel %vm2240, %v2265, %v2095
    %v2269 = vsel %vm2241, %v2265, %v2096
    %v2270 = vsel %vm2242, %v2265, %v2097
    %v2271 = vsel %vm2243, %v2265, %v2098
    %v2272 = vsel %vm2244, %v2265, %v2099
    %v2273 = vsel %vm2245, %v2265, %v2100
    %v2274 = vsel %vm2246, %v2265, %v2101
    %v2275 = vsel %vm2247, %v2265, %v2102
    %v2276 = vsel %vm2248, %v2265, %v2103
    %v2277 = vsel %vm2249, %v2265, %v2104
    %v2278 = vsel %vm2250, %v2265, %v2105
    %v2279 = vsel %vm2251, %v2265, %v2106
    %v2280 = vsel %vm2252, %v2265, %v2107
    %v2281 = vsel %vm2253, %v2265, %v2108
    %v2282 = vsel %vm2254, %v2265, %v2109
    %v2283 = vsel %vm2255, %v2265, %v2110
    %v2284 = vsel %vm2256, %v2265, %v2111
    %v2285 = vsel %vm2257, %v2265, %v2112
    %v2286 = vsel %vm2258, %v2265, %v2113
    %v2287 = vsel %vm2259, %v2265, %v2114
    %v2288 = vsel %vm2260, %v2265, %v2115
    %v2289 = vsel %vm2261, %v2265, %v2116
    %vm2290 = vcmp.eq.s32.totalorder %v12, 14
    %vm2291 = vcmp.eq.s32.totalorder %v13, 14
    %vm2292 = vcmp.eq.s32.totalorder %v14, 14
    %vm2293 = vcmp.eq.s32.totalorder %v15, 14
    %vm2294 = vcmp.eq.s32.totalorder %v16, 14
    %vm2295 = vcmp.eq.s32.totalorder %v17, 14
    %vm2296 = vcmp.eq.s32.totalorder %v18, 14
    %vm2297 = vcmp.eq.s32.totalorder %v19, 14
    %vm2298 = vcmp.eq.s32.totalorder %v20, 14
    %vm2299 = vcmp.eq.s32.totalorder %v21, 14
    %vm2300 = vcmp.eq.s32.totalorder %v22, 14
    %vm2301 = vcmp.eq.s32.totalorder %v23, 14
    %vm2302 = vcmp.eq.s32.totalorder %v24, 14
    %vm2303 = vcmp.eq.s32.totalorder %v25, 14
    %vm2304 = vcmp.eq.s32.totalorder %v26, 14
    %vm2305 = vcmp.eq.s32.totalorder %v27, 14
    %vm2306 = vcmp.eq.s32.totalorder %v28, 14
    %vm2307 = vcmp.eq.s32.totalorder %v29, 14
    %vm2308 = vcmp.eq.s32.totalorder %v30, 14
    %vm2309 = vcmp.eq.s32.totalorder %v31, 14
    %vm2310 = vcmp.eq.s32.totalorder %v32, 14
    %vm2311 = vcmp.eq.s32.totalorder %v33, 14
    %vm2312 = vcmp.eq.s32.totalorder %v34, 14
    %vm2313 = vcmp.eq.s32.totalorder %v35, 14
    %v2314 = vld [vmem:[%s1 + $0xe] sm:$0x1]
    %v2315 = vsel %vm2290, 1, 0
    %v2316 = vsel %vm2291, 1, 0
    %v2317 = vsel %vm2292, 1, 0
    %v2318 = vsel %vm2293, 1, 0
    %v2319 = vsel %vm2294, 1, 0
    %v2320 = vsel %vm2295, 1, 0
    %v2321 = vsel %vm2296, 1, 0
    %v2322 = vsel %vm2297, 1, 0
    %v2323 = vsel %vm2298, 1, 0
    %v2324 = vsel %vm2299, 1, 0
    %v2325 = vsel %vm2300, 1, 0
    %v2326 = vsel %vm2301, 1, 0
    %v2327 = vsel %vm2302, 1, 0
    %v2328 = vsel %vm2303, 1, 0
    %v2329 = vsel %vm2304, 1, 0
    %v2330 = vsel %vm2305, 1, 0
    %v2331 = vsel %vm2306, 1, 0
    %v2332 = vsel %vm2307, 1, 0
    %v2333 = vsel %vm2308, 1, 0
    %v2334 = vsel %vm2309, 1, 0
    %v2335 = vsel %vm2310, 1, 0
    %v2336 = vsel %vm2311, 1, 0
    %v2337 = vsel %vm2312, 1, 0
    %v2338 = vsel %vm2313, 1, 0
    %2339 = vset.pattern.permute.xlu0 0
    %2340 = vperm.xlu0 %2339, %v2315
    %v2341 = vpop.permute.xlu0 %2340
    %2342 = vset.pattern.permute.xlu0 0
    %2343 = vperm.xlu0 %2342, %v2316
    %v2344 = vpop.permute.xlu0 %2343
    %2345 = vset.pattern.permute.xlu0 0
    %2346 = vperm.xlu0 %2345, %v2317
    %v2347 = vpop.permute.xlu0 %2346
    %2348 = vset.pattern.permute.xlu0 0
    %2349 = vperm.xlu0 %2348, %v2318
    %v2350 = vpop.permute.xlu0 %2349
    %2351 = vset.pattern.permute.xlu0 0
    %2352 = vperm.xlu0 %2351, %v2319
    %v2353 = vpop.permute.xlu0 %2352
    %2354 = vset.pattern.permute.xlu0 0
    %2355 = vperm.xlu0 %2354, %v2320
    %v2356 = vpop.permute.xlu0 %2355
    %2357 = vset.pattern.permute.xlu0 0
    %2358 = vperm.xlu0 %2357, %v2321
    %v2359 = vpop.permute.xlu0 %2358
    %2360 = vset.pattern.permute.xlu0 0
    %2361 = vperm.xlu0 %2360, %v2322
    %v2362 = vpop.permute.xlu0 %2361
    %2363 = vset.pattern.permute.xlu0 0
    %2364 = vperm.xlu0 %2363, %v2323
    %v2365 = vpop.permute.xlu0 %2364
    %2366 = vset.pattern.permute.xlu0 0
    %2367 = vperm.xlu0 %2366, %v2324
    %v2368 = vpop.permute.xlu0 %2367
    %2369 = vset.pattern.permute.xlu0 0
    %2370 = vperm.xlu0 %2369, %v2325
    %v2371 = vpop.permute.xlu0 %2370
    %2372 = vset.pattern.permute.xlu0 0
    %2373 = vperm.xlu0 %2372, %v2326
    %v2374 = vpop.permute.xlu0 %2373
    %2375 = vset.pattern.permute.xlu0 0
    %2376 = vperm.xlu0 %2375, %v2327
    %v2377 = vpop.permute.xlu0 %2376
    %2378 = vset.pattern.permute.xlu0 0
    %2379 = vperm.xlu0 %2378, %v2328
    %v2380 = vpop.permute.xlu0 %2379
    %2381 = vset.pattern.permute.xlu0 0
    %2382 = vperm.xlu0 %2381, %v2329
    %v2383 = vpop.permute.xlu0 %2382
    %2384 = vset.pattern.permute.xlu0 0
    %2385 = vperm.xlu0 %2384, %v2330
    %v2386 = vpop.permute.xlu0 %2385
    %2387 = vset.pattern.permute.xlu0 0
    %2388 = vperm.xlu0 %2387, %v2331
    %v2389 = vpop.permute.xlu0 %2388
    %2390 = vset.pattern.permute.xlu0 0
    %2391 = vperm.xlu0 %2390, %v2332
    %v2392 = vpop.permute.xlu0 %2391
    %2393 = vset.pattern.permute.xlu0 0
    %2394 = vperm.xlu0 %2393, %v2333
    %v2395 = vpop.permute.xlu0 %2394
    %2396 = vset.pattern.permute.xlu0 0
    %2397 = vperm.xlu0 %2396, %v2334
    %v2398 = vpop.permute.xlu0 %2397
    %2399 = vset.pattern.permute.xlu0 0
    %2400 = vperm.xlu0 %2399, %v2335
    %v2401 = vpop.permute.xlu0 %2400
    %2402 = vset.pattern.permute.xlu0 0
    %2403 = vperm.xlu0 %2402, %v2336
    %v2404 = vpop.permute.xlu0 %2403
    %2405 = vset.pattern.permute.xlu0 0
    %2406 = vperm.xlu0 %2405, %v2337
    %v2407 = vpop.permute.xlu0 %2406
    %2408 = vset.pattern.permute.xlu0 0
    %2409 = vperm.xlu0 %2408, %v2338
    %v2410 = vpop.permute.xlu0 %2409
    %vm2411 = vcmp.eq.s32.totalorder %v2341, 1
    %vm2412 = vcmp.eq.s32.totalorder %v2344, 1
    %vm2413 = vcmp.eq.s32.totalorder %v2347, 1
    %vm2414 = vcmp.eq.s32.totalorder %v2350, 1
    %vm2415 = vcmp.eq.s32.totalorder %v2353, 1
    %vm2416 = vcmp.eq.s32.totalorder %v2356, 1
    %vm2417 = vcmp.eq.s32.totalorder %v2359, 1
    %vm2418 = vcmp.eq.s32.totalorder %v2362, 1
    %vm2419 = vcmp.eq.s32.totalorder %v2365, 1
    %vm2420 = vcmp.eq.s32.totalorder %v2368, 1
    %vm2421 = vcmp.eq.s32.totalorder %v2371, 1
    %vm2422 = vcmp.eq.s32.totalorder %v2374, 1
    %vm2423 = vcmp.eq.s32.totalorder %v2377, 1
    %vm2424 = vcmp.eq.s32.totalorder %v2380, 1
    %vm2425 = vcmp.eq.s32.totalorder %v2383, 1
    %vm2426 = vcmp.eq.s32.totalorder %v2386, 1
    %vm2427 = vcmp.eq.s32.totalorder %v2389, 1
    %vm2428 = vcmp.eq.s32.totalorder %v2392, 1
    %vm2429 = vcmp.eq.s32.totalorder %v2395, 1
    %vm2430 = vcmp.eq.s32.totalorder %v2398, 1
    %vm2431 = vcmp.eq.s32.totalorder %v2401, 1
    %vm2432 = vcmp.eq.s32.totalorder %v2404, 1
    %vm2433 = vcmp.eq.s32.totalorder %v2407, 1
    %vm2434 = vcmp.eq.s32.totalorder %v2410, 1
    %v2435 = vlaneseq
    %v2436 = vshrl.u32 %v2435, 7
    %v2437 = vsub.s32 0, %v2436
    %v2438 = vrot.slane %v2314, %v2437
    %v2439 = vsel %vm2411, %v2438, %v2266
    %v2440 = vsel %vm2412, %v2438, %v2267
    %v2441 = vsel %vm2413, %v2438, %v2268
    %v2442 = vsel %vm2414, %v2438, %v2269
    %v2443 = vsel %vm2415, %v2438, %v2270
    %v2444 = vsel %vm2416, %v2438, %v2271
    %v2445 = vsel %vm2417, %v2438, %v2272
    %v2446 = vsel %vm2418, %v2438, %v2273
    %v2447 = vsel %vm2419, %v2438, %v2274
    %v2448 = vsel %vm2420, %v2438, %v2275
    %v2449 = vsel %vm2421, %v2438, %v2276
    %v2450 = vsel %vm2422, %v2438, %v2277
    %v2451 = vsel %vm2423, %v2438, %v2278
    %v2452 = vsel %vm2424, %v2438, %v2279
    %v2453 = vsel %vm2425, %v2438, %v2280
    %v2454 = vsel %vm2426, %v2438, %v2281
    %v2455 = vsel %vm2427, %v2438, %v2282
    %v2456 = vsel %vm2428, %v2438, %v2283
    %v2457 = vsel %vm2429, %v2438, %v2284
    %v2458 = vsel %vm2430, %v2438, %v2285
    %v2459 = vsel %vm2431, %v2438, %v2286
    %v2460 = vsel %vm2432, %v2438, %v2287
    %v2461 = vsel %vm2433, %v2438, %v2288
    %v2462 = vsel %vm2434, %v2438, %v2289
    %vm2463 = vcmp.eq.s32.totalorder %v12, 15
    %vm2464 = vcmp.eq.s32.totalorder %v13, 15
    %vm2465 = vcmp.eq.s32.totalorder %v14, 15
    %vm2466 = vcmp.eq.s32.totalorder %v15, 15
    %vm2467 = vcmp.eq.s32.totalorder %v16, 15
    %vm2468 = vcmp.eq.s32.totalorder %v17, 15
    %vm2469 = vcmp.eq.s32.totalorder %v18, 15
    %vm2470 = vcmp.eq.s32.totalorder %v19, 15
    %vm2471 = vcmp.eq.s32.totalorder %v20, 15
    %vm2472 = vcmp.eq.s32.totalorder %v21, 15
    %vm2473 = vcmp.eq.s32.totalorder %v22, 15
    %vm2474 = vcmp.eq.s32.totalorder %v23, 15
    %vm2475 = vcmp.eq.s32.totalorder %v24, 15
    %vm2476 = vcmp.eq.s32.totalorder %v25, 15
    %vm2477 = vcmp.eq.s32.totalorder %v26, 15
    %vm2478 = vcmp.eq.s32.totalorder %v27, 15
    %vm2479 = vcmp.eq.s32.totalorder %v28, 15
    %vm2480 = vcmp.eq.s32.totalorder %v29, 15
    %vm2481 = vcmp.eq.s32.totalorder %v30, 15
    %vm2482 = vcmp.eq.s32.totalorder %v31, 15
    %vm2483 = vcmp.eq.s32.totalorder %v32, 15
    %vm2484 = vcmp.eq.s32.totalorder %v33, 15
    %vm2485 = vcmp.eq.s32.totalorder %v34, 15
    %vm2486 = vcmp.eq.s32.totalorder %v35, 15
    %v2487 = vld [vmem:[%s1 + $0xf] sm:$0x1]
    %v2488 = vsel %vm2463, 1, 0
    %v2489 = vsel %vm2464, 1, 0
    %v2490 = vsel %vm2465, 1, 0
    %v2491 = vsel %vm2466, 1, 0
    %v2492 = vsel %vm2467, 1, 0
    %v2493 = vsel %vm2468, 1, 0
    %v2494 = vsel %vm2469, 1, 0
    %v2495 = vsel %vm2470, 1, 0
    %v2496 = vsel %vm2471, 1, 0
    %v2497 = vsel %vm2472, 1, 0
    %v2498 = vsel %vm2473, 1, 0
    %v2499 = vsel %vm2474, 1, 0
    %v2500 = vsel %vm2475, 1, 0
    %v2501 = vsel %vm2476, 1, 0
    %v2502 = vsel %vm2477, 1, 0
    %v2503 = vsel %vm2478, 1, 0
    %v2504 = vsel %vm2479, 1, 0
    %v2505 = vsel %vm2480, 1, 0
    %v2506 = vsel %vm2481, 1, 0
    %v2507 = vsel %vm2482, 1, 0
    %v2508 = vsel %vm2483, 1, 0
    %v2509 = vsel %vm2484, 1, 0
    %v2510 = vsel %vm2485, 1, 0
    %v2511 = vsel %vm2486, 1, 0
    %2512 = vset.pattern.permute.xlu0 0
    %2513 = vperm.xlu0 %2512, %v2488
    %v2514 = vpop.permute.xlu0 %2513
    %2515 = vset.pattern.permute.xlu0 0
    %2516 = vperm.xlu0 %2515, %v2489
    %v2517 = vpop.permute.xlu0 %2516
    %2518 = vset.pattern.permute.xlu0 0
    %2519 = vperm.xlu0 %2518, %v2490
    %v2520 = vpop.permute.xlu0 %2519
    %2521 = vset.pattern.permute.xlu0 0
    %2522 = vperm.xlu0 %2521, %v2491
    %v2523 = vpop.permute.xlu0 %2522
    %2524 = vset.pattern.permute.xlu0 0
    %2525 = vperm.xlu0 %2524, %v2492
    %v2526 = vpop.permute.xlu0 %2525
    %2527 = vset.pattern.permute.xlu0 0
    %2528 = vperm.xlu0 %2527, %v2493
    %v2529 = vpop.permute.xlu0 %2528
    %2530 = vset.pattern.permute.xlu0 0
    %2531 = vperm.xlu0 %2530, %v2494
    %v2532 = vpop.permute.xlu0 %2531
    %2533 = vset.pattern.permute.xlu0 0
    %2534 = vperm.xlu0 %2533, %v2495
    %v2535 = vpop.permute.xlu0 %2534
    %2536 = vset.pattern.permute.xlu0 0
    %2537 = vperm.xlu0 %2536, %v2496
    %v2538 = vpop.permute.xlu0 %2537
    %2539 = vset.pattern.permute.xlu0 0
    %2540 = vperm.xlu0 %2539, %v2497
    %v2541 = vpop.permute.xlu0 %2540
    %2542 = vset.pattern.permute.xlu0 0
    %2543 = vperm.xlu0 %2542, %v2498
    %v2544 = vpop.permute.xlu0 %2543
    %2545 = vset.pattern.permute.xlu0 0
    %2546 = vperm.xlu0 %2545, %v2499
    %v2547 = vpop.permute.xlu0 %2546
    %2548 = vset.pattern.permute.xlu0 0
    %2549 = vperm.xlu0 %2548, %v2500
    %v2550 = vpop.permute.xlu0 %2549
    %2551 = vset.pattern.permute.xlu0 0
    %2552 = vperm.xlu0 %2551, %v2501
    %v2553 = vpop.permute.xlu0 %2552
    %2554 = vset.pattern.permute.xlu0 0
    %2555 = vperm.xlu0 %2554, %v2502
    %v2556 = vpop.permute.xlu0 %2555
    %2557 = vset.pattern.permute.xlu0 0
    %2558 = vperm.xlu0 %2557, %v2503
    %v2559 = vpop.permute.xlu0 %2558
    %2560 = vset.pattern.permute.xlu0 0
    %2561 = vperm.xlu0 %2560, %v2504
    %v2562 = vpop.permute.xlu0 %2561
    %2563 = vset.pattern.permute.xlu0 0
    %2564 = vperm.xlu0 %2563, %v2505
    %v2565 = vpop.permute.xlu0 %2564
    %2566 = vset.pattern.permute.xlu0 0
    %2567 = vperm.xlu0 %2566, %v2506
    %v2568 = vpop.permute.xlu0 %2567
    %2569 = vset.pattern.permute.xlu0 0
    %2570 = vperm.xlu0 %2569, %v2507
    %v2571 = vpop.permute.xlu0 %2570
    %2572 = vset.pattern.permute.xlu0 0
    %2573 = vperm.xlu0 %2572, %v2508
    %v2574 = vpop.permute.xlu0 %2573
    %2575 = vset.pattern.permute.xlu0 0
    %2576 = vperm.xlu0 %2575, %v2509
    %v2577 = vpop.permute.xlu0 %2576
    %2578 = vset.pattern.permute.xlu0 0
    %2579 = vperm.xlu0 %2578, %v2510
    %v2580 = vpop.permute.xlu0 %2579
    %2581 = vset.pattern.permute.xlu0 0
    %2582 = vperm.xlu0 %2581, %v2511
    %v2583 = vpop.permute.xlu0 %2582
    %vm2584 = vcmp.eq.s32.totalorder %v2514, 1
    %vm2585 = vcmp.eq.s32.totalorder %v2517, 1
    %vm2586 = vcmp.eq.s32.totalorder %v2520, 1
    %vm2587 = vcmp.eq.s32.totalorder %v2523, 1
    %vm2588 = vcmp.eq.s32.totalorder %v2526, 1
    %vm2589 = vcmp.eq.s32.totalorder %v2529, 1
    %vm2590 = vcmp.eq.s32.totalorder %v2532, 1
    %vm2591 = vcmp.eq.s32.totalorder %v2535, 1
    %vm2592 = vcmp.eq.s32.totalorder %v2538, 1
    %vm2593 = vcmp.eq.s32.totalorder %v2541, 1
    %vm2594 = vcmp.eq.s32.totalorder %v2544, 1
    %vm2595 = vcmp.eq.s32.totalorder %v2547, 1
    %vm2596 = vcmp.eq.s32.totalorder %v2550, 1
    %vm2597 = vcmp.eq.s32.totalorder %v2553, 1
    %vm2598 = vcmp.eq.s32.totalorder %v2556, 1
    %vm2599 = vcmp.eq.s32.totalorder %v2559, 1
    %vm2600 = vcmp.eq.s32.totalorder %v2562, 1
    %vm2601 = vcmp.eq.s32.totalorder %v2565, 1
    %vm2602 = vcmp.eq.s32.totalorder %v2568, 1
    %vm2603 = vcmp.eq.s32.totalorder %v2571, 1
    %vm2604 = vcmp.eq.s32.totalorder %v2574, 1
    %vm2605 = vcmp.eq.s32.totalorder %v2577, 1
    %vm2606 = vcmp.eq.s32.totalorder %v2580, 1
    %vm2607 = vcmp.eq.s32.totalorder %v2583, 1
    %v2608 = vlaneseq
    %v2609 = vshrl.u32 %v2608, 7
    %v2610 = vsub.s32 0, %v2609
    %v2611 = vrot.slane %v2487, %v2610
    %v2612 = vsel %vm2584, %v2611, %v2439
    %v2613 = vsel %vm2585, %v2611, %v2440
    %v2614 = vsel %vm2586, %v2611, %v2441
    %v2615 = vsel %vm2587, %v2611, %v2442
    %v2616 = vsel %vm2588, %v2611, %v2443
    %v2617 = vsel %vm2589, %v2611, %v2444
    %v2618 = vsel %vm2590, %v2611, %v2445
    %v2619 = vsel %vm2591, %v2611, %v2446
    %v2620 = vsel %vm2592, %v2611, %v2447
    %v2621 = vsel %vm2593, %v2611, %v2448
    %v2622 = vsel %vm2594, %v2611, %v2449
    %v2623 = vsel %vm2595, %v2611, %v2450
    %v2624 = vsel %vm2596, %v2611, %v2451
    %v2625 = vsel %vm2597, %v2611, %v2452
    %v2626 = vsel %vm2598, %v2611, %v2453
    %v2627 = vsel %vm2599, %v2611, %v2454
    %v2628 = vsel %vm2600, %v2611, %v2455
    %v2629 = vsel %vm2601, %v2611, %v2456
    %v2630 = vsel %vm2602, %v2611, %v2457
    %v2631 = vsel %vm2603, %v2611, %v2458
    %v2632 = vsel %vm2604, %v2611, %v2459
    %v2633 = vsel %vm2605, %v2611, %v2460
    %v2634 = vsel %vm2606, %v2611, %v2461
    %v2635 = vsel %vm2607, %v2611, %v2462
    %2636 = vst [vmem:[#allocation2] sm:$0xff] %v2612
    %2637 = vst [vmem:[#allocation2 + $0x8] sm:$0xff] %v2613
    %2638 = vst [vmem:[#allocation2 + $0x10] sm:$0xff] %v2614
    %2639 = vst [vmem:[#allocation2 + $0x18] sm:$0xff] %v2615
    %2640 = vst [vmem:[#allocation2 + $0x20] sm:$0xff] %v2616
    %2641 = vst [vmem:[#allocation2 + $0x28] sm:$0xff] %v2617
    %2642 = vst [vmem:[#allocation2 + $0x30] sm:$0xff] %v2618
    %2643 = vst [vmem:[#allocation2 + $0x38] sm:$0xff] %v2619
    %2644 = vst [vmem:[#allocation2 + $0x40] sm:$0xff] %v2620
    %2645 = vst [vmem:[#allocation2 + $0x48] sm:$0xff] %v2621
    %2646 = vst [vmem:[#allocation2 + $0x50] sm:$0xff] %v2622
    %2647 = vst [vmem:[#allocation2 + $0x58] sm:$0xff] %v2623
    %2648 = vst [vmem:[#allocation2 + $0x60] sm:$0xff] %v2624
    %2649 = vst [vmem:[#allocation2 + $0x68] sm:$0xff] %v2625
    %2650 = vst [vmem:[#allocation2 + $0x70] sm:$0xff] %v2626
    %2651 = vst [vmem:[#allocation2 + $0x78] sm:$0xff] %v2627
    %2652 = vst [vmem:[#allocation2 + $0x80] sm:$0xff] %v2628
    %2653 = vst [vmem:[#allocation2 + $0x88] sm:$0xff] %v2629
    %2654 = vst [vmem:[#allocation2 + $0x90] sm:$0xff] %v2630
    %2655 = vst [vmem:[#allocation2 + $0x98] sm:$0xff] %v2631
    %2656 = vst [vmem:[#allocation2 + $0xa0] sm:$0xff] %v2632
    %2657 = vst [vmem:[#allocation2 + $0xa8] sm:$0xff] %v2633
    %2658 = vst [vmem:[#allocation2 + $0xb0] sm:$0xff] %v2634
    %2659 = vst [vmem:[#allocation2 + $0xb8] sm:$0xff] %v2635
    // Predicated region
    $region10: #{tpu_custom_call.1} parent=1 // pred_check
      _
    $region11: #{tpu_custom_call.1} parent=1 // pred_check_branch
      %2661 = sbr.rel (0) target = $region13
    $region12: #{tpu_custom_call.1} parent=1 // pred_region
      %s2663 = ssub.s32 3072, 3072
      %2664 = vsyncadd [#allocation3], %s2663
      %s2665 = sshll.u32 [#allocation2], 4
      %s2666 = int_to_ptr.vmem [resolvable:$true] %s2665
      %2671 = dma.vmem_to_hbm [thread:$0]  %s2666, 3072, %s2, [#allocation3], 128, 128, 8
    $region13: #{tpu_custom_call.1} parent=1 // pred_fallthru
      _
    // Predicated region
    $region14: #{tpu_custom_call.1} parent=1 // pred_check
      _
    $region15: #{tpu_custom_call.1} parent=1 // pred_check_branch
      %2673 = sbr.rel (0) target = $region17
    $region16: #{tpu_custom_call.1} parent=1 // pred_region
      %2674 = dma.done [#allocation3], 3072
    $region17: #{tpu_custom_call.1} parent=1 // pred_fallthru
      _
    %2675 = vsyncpa [#allocation3], 1

</llo_original>
